<compile_context>
chip_gen: v6e
topology: v6e:2x2x1
jax: 0.10.0
libtpu: 0.0.40
codegen_flags: <defaults>
</compile_context>

<pallas_src>
import functools

import jax
import jax.numpy as jnp
from jax.experimental import pallas as pl
from jax.experimental.pallas import tpu as pltpu

EPS = 1e-5
_SQRT2 = 1.4142135623730951


def _gelu(x):
    # Exact (erf-based) GELU, matching PyTorch nn.GELU()/F.gelu default.
    # TODO(synk): a tanh-approx GELU would move this work from the VALU to the
    # otherwise-idle EUP, but deviates from PyTorch's exact GELU.
    return 0.5 * x * (1.0 + jax.lax.erf(x / jnp.float32(_SQRT2)))


def _round_up(v, m):
    return -(-v // m) * m


def _mod(a, m):
    # power-of-two fast path (cheap VPU bit-op), generic remainder otherwise
    return jnp.bitwise_and(a, m - 1) if (m & (m - 1)) == 0 else a % m


def _make_tap_masks(H, W, BB):
    """One (1, BB*H*W) f32 validity mask per 3x3 tap (None for the centre).

    Batch samples are concatenated along the lane axis; the per-sample border
    masks also zero any roll wrap-around between adjacent samples, so the wide
    layout stays exactly equivalent to per-sample "same" padding.
    """
    HW = H * W
    L = BB * HW
    q = jax.lax.broadcasted_iota(jnp.int32, (1, L), 1)
    p = _mod(q, HW)                                   # pixel index within sample
    col = _mod(p, W)
    top = (p >= W).astype(jnp.float32)                # tap dy = -1 valid
    bot = (p < (H - 1) * W).astype(jnp.float32)       # tap dy = +1 valid
    lef = (col >= 1).astype(jnp.float32)              # tap dx = -1 valid
    rig = (col <= W - 2).astype(jnp.float32)          # tap dx = +1 valid
    return {
        (-1, -1): top * lef, (-1, 0): top, (-1, 1): top * rig,
        (0, -1): lef,        (0, 0): None, (0, 1): rig,
        (1, -1): bot * lef,  (1, 0): bot,  (1, 1): bot * rig,
    }


def _convs_kernel(x_ref, g1_ref, b1_ref, w1_ref, cb1_ref,
                  g2_ref, b2_ref, w2_ref, cb2_ref, out_ref,
                  *, H, W, BB, CP1, CP2):
    """One batch-block (BB samples) per grid step, wide (C, BB*H*W) layout.

    x_ref   : (BB, CIN, H*W)  channels on sublanes, pixels on lanes
    g*/b*   : (C, 1)          GroupNorm affine params
    w*_ref  : (COUT, 9*Cp)    bf16 im2col weights, column = (ky*3+kx)*Cp + c
    cb*_ref : (COUT, 1)       conv bias
    out_ref : (BB, COUT, H*W)
    """
    HW = H * W
    L = BB * HW
    masks = _make_tap_masks(H, W, BB)

    def groupnorm(x, g, b):
        # Per-sample GroupNorm(1, C): two scalar reductions (mean, mean(x*x)),
        # affine fused into a single scale/shift full-tile mul+add.
        mu = jnp.mean(x)
        var = jnp.maximum(jnp.mean(x * x) - mu * mu, 0.0)
        scale = g * jax.lax.rsqrt(var + EPS)          # (C, 1)
        return x * scale + (b - mu * scale)

    def im2col(x, cp):
        # (C, L) f32 -> (9*cp, L) bf16; row t*cp + c = channel c at tap t.
        c = x.shape[0]
        if cp > c:   # zero rows keep the sublane concat 8-aligned
            x = jnp.concatenate(
                [x, jnp.zeros((cp - c, L), jnp.float32)], axis=0)
        pieces = []
        for t in range(9):
            dy, dx = t // 3 - 1, t % 3 - 1
            s = dy * W + dx                           # flat-index shift
            p = x if s == 0 else pltpu.roll(x, shift=(-s) % L, axis=1)
            m = masks[(dy, dx)]
            if m is not None:
                p = p * m                             # one mask multiply per tap
            pieces.append(p.astype(jnp.bfloat16))     # bf16 at the MXU boundary
        return jnp.concatenate(pieces, axis=0)

    def conv3x3(x, cp, w_ref, cb_ref):
        # Single lane-dense MXU matmul: (COUT, 9cp) @ (9cp, BB*HW), f32 accum.
        return jnp.dot(w_ref[...], im2col(x, cp),
                       preferred_element_type=jnp.float32) + cb_ref[...]

    g1, b1 = g1_ref[...], b1_ref[...]
    g2, b2 = g2_ref[...], b2_ref[...]

    # --- GN1 per sample, then lay the samples side-by-side on the lane axis.
    parts = [groupnorm(x_ref[b].astype(jnp.float32), g1, b1)
             for b in range(BB)]
    xw = parts[0] if BB == 1 else jnp.concatenate(parts, axis=1)    # (CIN, L)

    h = _gelu(conv3x3(xw, CP1, w1_ref, cb1_ref))                    # (COUT, L)

    # --- GN2 per sample (static, lane-aligned slices of the wide activation).
    parts = [groupnorm(h[:, b * HW:(b + 1) * HW], g2, b2) for b in range(BB)]
    hn = parts[0] if BB == 1 else jnp.concatenate(parts, axis=1)    # (COUT, L)

    y = _gelu(conv3x3(hn, CP2, w2_ref, cb2_ref))                    # (COUT, L)

    for b in range(BB):                     # lane-dense (128-multiple) stores
        out_ref[b] = y[:, b * HW:(b + 1) * HW].astype(out_ref.dtype)


def _pack_weight(w, cp):
    # (COUT, CIN, 3, 3) -> (COUT, 9*cp) bf16, column = (ky*3+kx)*cp + c,
    # zero-padded channel columns matching the zero rows added in im2col.
    cout, cin, kh, kw = w.shape
    wt = jnp.transpose(w, (0, 2, 3, 1))               # (COUT, 3, 3, CIN)
    if cp > cin:
        wt = jnp.pad(wt, ((0, 0), (0, 0), (0, 0), (0, cp - cin)))
    return wt.reshape(cout, kh * kw * cp).astype(jnp.bfloat16)


def _pick_batch_block(N, CIN, COUT, HW, CP1, CP2):
    # Rough per-sample in-kernel working set: f32 activations + bf16 patch.
    per_sample = (CIN + 3 * COUT) * HW * 4 + 9 * max(CP1, CP2) * HW * 2
    budget = 6 * 1024 * 1024      # stay far under v5e's 16 MiB scoped default
    cap = max(1, min(budget // max(per_sample, 1), 8))
    best = 1
    for bb in range(1, N + 1):
        if N % bb:                # only divisors -> no partially-valid blocks
            continue
        if bb > cap:
            break
        if N // bb < 2 and N > 1:
            break                 # keep >=2 grid steps so both v7x TCs get work
        best = bb
    return best


def convs_forward(x_nchw, params, *, batch_block=None):
    """params = (g1, b1, w1, cb1, g2, b2, w2, cb2) with PyTorch shapes."""
    g1, b1, w1, cb1, g2, b2, w2, cb2 = params
    N, CIN, H, W = x_nchw.shape
    COUT = w1.shape[0]
    HW = H * W

    assert H >= 2 and W >= 2, "roll+mask 3x3 conv assumes H, W >= 2"
    assert HW % 128 == 0, "lane-dense layout assumes H*W multiple of 128"

    CP1 = _round_up(CIN, 8)
    CP2 = _round_up(COUT, 8)
    BB = batch_block or _pick_batch_block(N, CIN, COUT, HW, CP1, CP2)
    assert N % BB == 0, "batch block must divide N"

    # NCHW consumed / produced directly -- only free reshapes at the boundary.
    # TODO(synk): accept/emit bf16 activations here if the surrounding model is
    # bf16 (halves the HBM traffic that dominates at real DDPM sizes).
    x_flat = x_nchw.reshape(N, CIN, HW).astype(jnp.float32)
    w1_mat = _pack_weight(w1, CP1)       # (COUT, 9*CP1) bf16
    w2_mat = _pack_weight(w2, CP2)       # (COUT, 9*CP2) bf16

    # TODO(synk): for real H/W/C add an H-tiling grid axis with a 1-row halo and
    # a K-blocked f32 accumulator; budget the one-shot im2col patch against
    # v7x's 64 MiB physical VMEM (32 MiB scoped default) / v5e's 16 MiB default
    # and set vmem_limit_bytes explicitly. At these sizes the per-step footprint
    # is a few hundred KiB, far under every default.
    out_flat = pl.pallas_call(
        functools.partial(_convs_kernel, H=H, W=W, BB=BB, CP1=CP1, CP2=CP2),
        out_shape=jax.ShapeDtypeStruct((N, COUT, HW), jnp.float32),
        grid=(N // BB,),
        in_specs=[
            pl.BlockSpec((BB, CIN, HW), lambda n: (n, 0, 0)),
            pl.BlockSpec((CIN, 1), lambda n: (0, 0)),
            pl.BlockSpec((CIN, 1), lambda n: (0, 0)),
            pl.BlockSpec((COUT, 9 * CP1), lambda n: (0, 0)),
            pl.BlockSpec((COUT, 1), lambda n: (0, 0)),
            pl.BlockSpec((COUT, 1), lambda n: (0, 0)),
            pl.BlockSpec((COUT, 1), lambda n: (0, 0)),
            pl.BlockSpec((COUT, 9 * CP2), lambda n: (0, 0)),
            pl.BlockSpec((COUT, 1), lambda n: (0, 0)),
        ],
        out_specs=pl.BlockSpec((BB, COUT, HW), lambda n: (n, 0, 0)),
        compiler_params=pltpu.CompilerParams(
            dimension_semantics=("parallel",)),
    )(x_flat,
      g1.reshape(CIN, 1), b1.reshape(CIN, 1), w1_mat, cb1.reshape(COUT, 1),
      g2.reshape(COUT, 1), b2.reshape(COUT, 1), w2_mat, cb2.reshape(COUT, 1))

    return out_flat.reshape(N, COUT, H, W)


def _reference_forward(x, params):
    """Pure-JAX NCHW reference mirroring the PyTorch module (HIGHEST precision)."""
    g1, b1, w1, cb1, g2, b2, w2, cb2 = params

    def gn(h, g, b):
        mu = h.mean(axis=(1, 2, 3), keepdims=True)
        var = jnp.square(h - mu).mean(axis=(1, 2, 3), keepdims=True)
        hn = (h - mu) / jnp.sqrt(var + EPS)
        return hn * g[None, :, None, None] + b[None, :, None, None]

    def conv(h, w, b):
        y = jax.lax.conv_general_dilated(
            h, w, window_strides=(1, 1), padding="SAME",
            dimension_numbers=("NCHW", "OIHW", "NCHW"),
            precision=jax.lax.Precision.HIGHEST)
        return y + b[None, :, None, None]

    def gelu(z):
        return 0.5 * z * (1.0 + jax.scipy.special.erf(z / jnp.float32(_SQRT2)))

    h = gn(x, g1, b1)
    h = conv(h, w1, cb1)
    h = gelu(h)
    h = gn(h, g2, b2)
    h = conv(h, w2, cb2)
    return gelu(h)


if __name__ == "__main__":
    # N=4 so the auto-picked batch block is 2 -> grid=(2,): both the wide
    # (2 samples per step) matmul path and the 2-step parallel grid are hit.
    N, CIN, COUT, H, W = 4, 4, 8, 16, 16
    key = jax.random.PRNGKey(0)
    ks = jax.random.split(key, 9)

    x = jax.random.normal(ks[0], (N, CIN, H, W), jnp.float32)
    g1 = 1.0 + 0.1 * jax.random.normal(ks[1], (CIN,), jnp.float32)
    b1 = 0.1 * jax.random.normal(ks[2], (CIN,), jnp.float32)
    w1 = 0.2 * jax.random.normal(ks[3], (COUT, CIN, 3, 3), jnp.float32)
    cb1 = 0.1 * jax.random.normal(ks[4], (COUT,), jnp.float32)
    g2 = 1.0 + 0.1 * jax.random.normal(ks[5], (COUT,), jnp.float32)
    b2 = 0.1 * jax.random.normal(ks[6], (COUT,), jnp.float32)
    w2 = 0.2 * jax.random.normal(ks[7], (COUT, COUT, 3, 3), jnp.float32)
    cb2 = 0.1 * jax.random.normal(ks[8], (COUT,), jnp.float32)
    params = (g1, b1, w1, cb1, g2, b2, w2, cb2)

    out = jax.block_until_ready(convs_forward(x, params))
    ref = jax.block_until_ready(_reference_forward(x, params))

    assert out.shape == (N, COUT, H, W)
    # kernel feeds the MXU bf16 patches/weights (f32 accumulate) vs an
    # f32-HIGHEST reference, so the tolerance stays loose per the perf review.
    max_err = float(jnp.max(jnp.abs(out - ref)))
    assert max_err < 5e-2, f"mismatch vs reference: max_err={max_err}"
    print("KERNEL_OK")
</pallas_src>

<mosaic_0001>
module attributes {stable_mosaic.version = 11 : i64} {
  func.func @_convs_kernel(%arg0: i32, %arg1: memref<2x4x256xf32, #tpu.memory_space<vmem>>, %arg2: memref<4x1xf32, #tpu.memory_space<vmem>>, %arg3: memref<4x1xf32, #tpu.memory_space<vmem>>, %arg4: memref<8x72xbf16, #tpu.memory_space<vmem>>, %arg5: memref<8x1xf32, #tpu.memory_space<vmem>>, %arg6: memref<8x1xf32, #tpu.memory_space<vmem>>, %arg7: memref<8x1xf32, #tpu.memory_space<vmem>>, %arg8: memref<8x72xbf16, #tpu.memory_space<vmem>>, %arg9: memref<8x1xf32, #tpu.memory_space<vmem>>, %arg10: memref<2x8x256xf32, #tpu.memory_space<vmem>>) attributes {dimension_semantics = [#tpu.dimension_semantics<parallel>], iteration_bounds = array<i64: 2>, scalar_prefetch = 0 : i64, scratch_operands = 0 : i64, tpu.core_type = #tpu.core_type<tc>, window_params = [{transform_indices = @transform_0, window_bounds = array<i64: 2, 4, 256>}, {pipeline_mode = #tpu.pipeline_mode<synchronous>, transform_indices = @transform_1, window_bounds = array<i64: 4, 1>}, {pipeline_mode = #tpu.pipeline_mode<synchronous>, transform_indices = @transform_2, window_bounds = array<i64: 4, 1>}, {pipeline_mode = #tpu.pipeline_mode<synchronous>, transform_indices = @transform_3, window_bounds = array<i64: 8, 72>}, {pipeline_mode = #tpu.pipeline_mode<synchronous>, transform_indices = @transform_4, window_bounds = array<i64: 8, 1>}, {pipeline_mode = #tpu.pipeline_mode<synchronous>, transform_indices = @transform_5, window_bounds = array<i64: 8, 1>}, {pipeline_mode = #tpu.pipeline_mode<synchronous>, transform_indices = @transform_6, window_bounds = array<i64: 8, 1>}, {pipeline_mode = #tpu.pipeline_mode<synchronous>, transform_indices = @transform_7, window_bounds = array<i64: 8, 72>}, {pipeline_mode = #tpu.pipeline_mode<synchronous>, transform_indices = @transform_8, window_bounds = array<i64: 8, 1>}, {transform_indices = @transform_9, window_bounds = array<i64: 2, 8, 256>}]} {
    %0 = tpu.iota {dimensions = array<i32: 1>} : vector<1x512xi32>
    %c255_i32 = arith.constant 255 : i32
    %1 = vector.broadcast %c255_i32 : i32 to vector<1x512xi32>
    %2 = arith.andi %0, %1 : vector<1x512xi32>
    %c15_i32 = arith.constant 15 : i32
    %3 = vector.broadcast %c15_i32 : i32 to vector<1x512xi32>
    %4 = arith.andi %2, %3 : vector<1x512xi32>
    %c16_i32 = arith.constant 16 : i32
    %5 = vector.broadcast %c16_i32 : i32 to vector<1x512xi32>
    %6 = arith.cmpi sge, %2, %5 : vector<1x512xi32>
    %7 = arith.extui %6 : vector<1x512xi1> to vector<1x512xi32>
    %8 = arith.sitofp %7 : vector<1x512xi32> to vector<1x512xf32>
    %c240_i32 = arith.constant 240 : i32
    %9 = vector.broadcast %c240_i32 : i32 to vector<1x512xi32>
    %10 = arith.cmpi slt, %2, %9 : vector<1x512xi32>
    %11 = arith.extui %10 : vector<1x512xi1> to vector<1x512xi32>
    %12 = arith.sitofp %11 : vector<1x512xi32> to vector<1x512xf32>
    %c1_i32 = arith.constant 1 : i32
    %13 = vector.broadcast %c1_i32 : i32 to vector<1x512xi32>
    %14 = arith.cmpi sge, %4, %13 : vector<1x512xi32>
    %15 = arith.extui %14 : vector<1x512xi1> to vector<1x512xi32>
    %16 = arith.sitofp %15 : vector<1x512xi32> to vector<1x512xf32>
    %c14_i32 = arith.constant 14 : i32
    %17 = vector.broadcast %c14_i32 : i32 to vector<1x512xi32>
    %18 = arith.cmpi sle, %4, %17 : vector<1x512xi32>
    %19 = arith.extui %18 : vector<1x512xi1> to vector<1x512xi32>
    %20 = arith.sitofp %19 : vector<1x512xi32> to vector<1x512xf32>
    %21 = arith.mulf %8, %16 : vector<1x512xf32>
    %22 = arith.mulf %8, %20 : vector<1x512xf32>
    %23 = arith.mulf %12, %16 : vector<1x512xf32>
    %24 = arith.mulf %12, %20 : vector<1x512xf32>
    %c0 = arith.constant 0 : index
    %c0_0 = arith.constant 0 : index
    %25 = vector.load %arg2[%c0, %c0_0] : memref<4x1xf32, #tpu.memory_space<vmem>>, vector<4x1xf32>
    %c0_1 = arith.constant 0 : index
    %c0_2 = arith.constant 0 : index
    %26 = vector.load %arg3[%c0_1, %c0_2] : memref<4x1xf32, #tpu.memory_space<vmem>>, vector<4x1xf32>
    %c0_3 = arith.constant 0 : index
    %c0_4 = arith.constant 0 : index
    %27 = vector.load %arg6[%c0_3, %c0_4] : memref<8x1xf32, #tpu.memory_space<vmem>>, vector<8x1xf32>
    %c0_5 = arith.constant 0 : index
    %c0_6 = arith.constant 0 : index
    %28 = vector.load %arg7[%c0_5, %c0_6] : memref<8x1xf32, #tpu.memory_space<vmem>>, vector<8x1xf32>
    %c0_7 = arith.constant 0 : index
    %c0_8 = arith.constant 0 : index
    %c0_9 = arith.constant 0 : index
    %29 = vector.load %arg1[%c0_7, %c0_8, %c0_9] : memref<2x4x256xf32, #tpu.memory_space<vmem>>, vector<1x4x256xf32>
    %30 = vector.shape_cast %29 : vector<1x4x256xf32> to vector<4x256xf32>
    %31 = vector.shape_cast %30 : vector<4x256xf32> to vector<1x4x256xf32>
    %cst = arith.constant dense<0.000000e+00> : vector<1xf32>
    %32 = vector.multi_reduction <add>, %31, %cst [1, 2] : vector<1x4x256xf32> to vector<1xf32>
    %33 = vector.shape_cast %32 : vector<1xf32> to vector<1x1x1xf32>
    %34 = vector.extract %33[0, 0, 0] : f32 from vector<1x1x1xf32>
    %cst_10 = arith.constant 1.024000e+03 : f32
    %35 = arith.divf %34, %cst_10 : f32
    %36 = arith.mulf %30, %30 : vector<4x256xf32>
    %37 = vector.shape_cast %36 : vector<4x256xf32> to vector<1x4x256xf32>
    %cst_11 = arith.constant dense<0.000000e+00> : vector<1xf32>
    %38 = vector.multi_reduction <add>, %37, %cst_11 [1, 2] : vector<1x4x256xf32> to vector<1xf32>
    %39 = vector.shape_cast %38 : vector<1xf32> to vector<1x1x1xf32>
    %40 = vector.extract %39[0, 0, 0] : f32 from vector<1x1x1xf32>
    %cst_12 = arith.constant 1.024000e+03 : f32
    %41 = arith.divf %40, %cst_12 : f32
    %42 = arith.mulf %35, %35 : f32
    %43 = arith.subf %41, %42 : f32
    %cst_13 = arith.constant 0.000000e+00 : f32
    %44 = arith.maximumf %43, %cst_13 : f32
    %cst_14 = arith.constant 9.99999974E-6 : f32
    %45 = arith.addf %44, %cst_14 : f32
    %46 = math.rsqrt %45 : f32
    %47 = vector.broadcast %46 : f32 to vector<4x1xf32>
    %48 = arith.mulf %25, %47 : vector<4x1xf32>
    %49 = vector.broadcast %48 : vector<4x1xf32> to vector<4x256xf32>
    %50 = arith.mulf %30, %49 : vector<4x256xf32>
    %51 = vector.broadcast %35 : f32 to vector<4x1xf32>
    %52 = arith.mulf %51, %48 : vector<4x1xf32>
    %53 = arith.subf %26, %52 : vector<4x1xf32>
    %54 = vector.broadcast %53 : vector<4x1xf32> to vector<4x256xf32>
    %55 = arith.addf %50, %54 : vector<4x256xf32>
    %c1 = arith.constant 1 : index
    %c0_15 = arith.constant 0 : index
    %c0_16 = arith.constant 0 : index
    %56 = vector.load %arg1[%c1, %c0_15, %c0_16] : memref<2x4x256xf32, #tpu.memory_space<vmem>>, vector<1x4x256xf32>
    %57 = vector.shape_cast %56 : vector<1x4x256xf32> to vector<4x256xf32>
    %58 = vector.shape_cast %57 : vector<4x256xf32> to vector<1x4x256xf32>
    %cst_17 = arith.constant dense<0.000000e+00> : vector<1xf32>
    %59 = vector.multi_reduction <add>, %58, %cst_17 [1, 2] : vector<1x4x256xf32> to vector<1xf32>
    %60 = vector.shape_cast %59 : vector<1xf32> to vector<1x1x1xf32>
    %61 = vector.extract %60[0, 0, 0] : f32 from vector<1x1x1xf32>
    %cst_18 = arith.constant 1.024000e+03 : f32
    %62 = arith.divf %61, %cst_18 : f32
    %63 = arith.mulf %57, %57 : vector<4x256xf32>
    %64 = vector.shape_cast %63 : vector<4x256xf32> to vector<1x4x256xf32>
    %cst_19 = arith.constant dense<0.000000e+00> : vector<1xf32>
    %65 = vector.multi_reduction <add>, %64, %cst_19 [1, 2] : vector<1x4x256xf32> to vector<1xf32>
    %66 = vector.shape_cast %65 : vector<1xf32> to vector<1x1x1xf32>
    %67 = vector.extract %66[0, 0, 0] : f32 from vector<1x1x1xf32>
    %cst_20 = arith.constant 1.024000e+03 : f32
    %68 = arith.divf %67, %cst_20 : f32
    %69 = arith.mulf %62, %62 : f32
    %70 = arith.subf %68, %69 : f32
    %cst_21 = arith.constant 0.000000e+00 : f32
    %71 = arith.maximumf %70, %cst_21 : f32
    %cst_22 = arith.constant 9.99999974E-6 : f32
    %72 = arith.addf %71, %cst_22 : f32
    %73 = math.rsqrt %72 : f32
    %74 = vector.broadcast %73 : f32 to vector<4x1xf32>
    %75 = arith.mulf %25, %74 : vector<4x1xf32>
    %76 = vector.broadcast %75 : vector<4x1xf32> to vector<4x256xf32>
    %77 = arith.mulf %57, %76 : vector<4x256xf32>
    %78 = vector.broadcast %62 : f32 to vector<4x1xf32>
    %79 = arith.mulf %78, %75 : vector<4x1xf32>
    %80 = arith.subf %26, %79 : vector<4x1xf32>
    %81 = vector.broadcast %80 : vector<4x1xf32> to vector<4x256xf32>
    %82 = arith.addf %77, %81 : vector<4x256xf32>
    %83 = tpu.concatenate %55, %82 in 1 : vector<4x256xf32>, vector<4x256xf32> -> vector<4x512xf32>
    %c0_23 = arith.constant 0 : index
    %c0_24 = arith.constant 0 : index
    %84 = vector.load %arg4[%c0_23, %c0_24] : memref<8x72xbf16, #tpu.memory_space<vmem>>, vector<8x72xbf16>
    %cst_25 = arith.constant 0.000000e+00 : f32
    %85 = vector.broadcast %cst_25 : f32 to vector<4x512xf32>
    %86 = tpu.concatenate %83, %85 in 0 : vector<4x512xf32>, vector<4x512xf32> -> vector<8x512xf32>
    %c17_i32 = arith.constant 17 : i32
    %87 = tpu.dynamic_rotate %86 by %c17_i32 dim 1 : vector<8x512xf32>, i32 -> vector<8x512xf32>
    %88 = vector.broadcast %21 : vector<1x512xf32> to vector<8x512xf32>
    %89 = arith.mulf %87, %88 : vector<8x512xf32>
    %90 = arith.truncf %89 : vector<8x512xf32> to vector<8x512xbf16>
    %c16_i32_26 = arith.constant 16 : i32
    %91 = tpu.dynamic_rotate %86 by %c16_i32_26 dim 1 : vector<8x512xf32>, i32 -> vector<8x512xf32>
    %92 = vector.broadcast %8 : vector<1x512xf32> to vector<8x512xf32>
    %93 = arith.mulf %91, %92 : vector<8x512xf32>
    %94 = arith.truncf %93 : vector<8x512xf32> to vector<8x512xbf16>
    %c15_i32_27 = arith.constant 15 : i32
    %95 = tpu.dynamic_rotate %86 by %c15_i32_27 dim 1 : vector<8x512xf32>, i32 -> vector<8x512xf32>
    %96 = vector.broadcast %22 : vector<1x512xf32> to vector<8x512xf32>
    %97 = arith.mulf %95, %96 : vector<8x512xf32>
    %98 = arith.truncf %97 : vector<8x512xf32> to vector<8x512xbf16>
    %c1_i32_28 = arith.constant 1 : i32
    %99 = tpu.dynamic_rotate %86 by %c1_i32_28 dim 1 : vector<8x512xf32>, i32 -> vector<8x512xf32>
    %100 = vector.broadcast %16 : vector<1x512xf32> to vector<8x512xf32>
    %101 = arith.mulf %99, %100 : vector<8x512xf32>
    %102 = arith.truncf %101 : vector<8x512xf32> to vector<8x512xbf16>
    %103 = arith.truncf %86 : vector<8x512xf32> to vector<8x512xbf16>
    %c511_i32 = arith.constant 511 : i32
    %104 = tpu.dynamic_rotate %86 by %c511_i32 dim 1 : vector<8x512xf32>, i32 -> vector<8x512xf32>
    %105 = vector.broadcast %20 : vector<1x512xf32> to vector<8x512xf32>
    %106 = arith.mulf %104, %105 : vector<8x512xf32>
    %107 = arith.truncf %106 : vector<8x512xf32> to vector<8x512xbf16>
    %c497_i32 = arith.constant 497 : i32
    %108 = tpu.dynamic_rotate %86 by %c497_i32 dim 1 : vector<8x512xf32>, i32 -> vector<8x512xf32>
    %109 = vector.broadcast %23 : vector<1x512xf32> to vector<8x512xf32>
    %110 = arith.mulf %108, %109 : vector<8x512xf32>
    %111 = arith.truncf %110 : vector<8x512xf32> to vector<8x512xbf16>
    %c496_i32 = arith.constant 496 : i32
    %112 = tpu.dynamic_rotate %86 by %c496_i32 dim 1 : vector<8x512xf32>, i32 -> vector<8x512xf32>
    %113 = vector.broadcast %12 : vector<1x512xf32> to vector<8x512xf32>
    %114 = arith.mulf %112, %113 : vector<8x512xf32>
    %115 = arith.truncf %114 : vector<8x512xf32> to vector<8x512xbf16>
    %c495_i32 = arith.constant 495 : i32
    %116 = tpu.dynamic_rotate %86 by %c495_i32 dim 1 : vector<8x512xf32>, i32 -> vector<8x512xf32>
    %117 = vector.broadcast %24 : vector<1x512xf32> to vector<8x512xf32>
    %118 = arith.mulf %116, %117 : vector<8x512xf32>
    %119 = arith.truncf %118 : vector<8x512xf32> to vector<8x512xbf16>
    %120 = tpu.concatenate %90, %94, %98, %102, %103, %107, %111, %115, %119 in 0 : vector<8x512xbf16>, vector<8x512xbf16>, vector<8x512xbf16>, vector<8x512xbf16>, vector<8x512xbf16>, vector<8x512xbf16>, vector<8x512xbf16>, vector<8x512xbf16>, vector<8x512xbf16> -> vector<72x512xbf16>
    %cst_29 = arith.constant dense<0.000000e+00> : vector<8x512xf32>
    %121 = tpu.matmul %84, %120, %cst_29 {dimension_numbers = #tpu.dot_dimension_numbers<[1], [0], [0], [1], [0, 0, 1, 1], [], []>} : vector<8x72xbf16>, vector<72x512xbf16>, vector<8x512xf32> -> vector<8x512xf32>
    %c0_30 = arith.constant 0 : index
    %c0_31 = arith.constant 0 : index
    %122 = vector.load %arg5[%c0_30, %c0_31] : memref<8x1xf32, #tpu.memory_space<vmem>>, vector<8x1xf32>
    %123 = vector.broadcast %122 : vector<8x1xf32> to vector<8x512xf32>
    %124 = arith.addf %121, %123 : vector<8x512xf32>
    %cst_32 = arith.constant 5.000000e-01 : f32
    %125 = vector.broadcast %cst_32 : f32 to vector<8x512xf32>
    %126 = arith.mulf %125, %124 : vector<8x512xf32>
    %cst_33 = arith.constant 1.41421354 : f32
    %127 = vector.broadcast %cst_33 : f32 to vector<8x512xf32>
    %128 = arith.divf %124, %127 : vector<8x512xf32>
    %129 = math.erf %128 : vector<8x512xf32>
    %cst_34 = arith.constant 1.000000e+00 : f32
    %130 = vector.broadcast %cst_34 : f32 to vector<8x512xf32>
    %131 = arith.addf %130, %129 : vector<8x512xf32>
    %132 = arith.mulf %126, %131 : vector<8x512xf32>
    %133 = vector.extract_strided_slice %132 {offsets = [0, 0], sizes = [8, 256], strides = [1, 1]} : vector<8x512xf32> to vector<8x256xf32>
    %134 = vector.shape_cast %133 : vector<8x256xf32> to vector<1x8x256xf32>
    %cst_35 = arith.constant dense<0.000000e+00> : vector<1xf32>
    %135 = vector.multi_reduction <add>, %134, %cst_35 [1, 2] : vector<1x8x256xf32> to vector<1xf32>
    %136 = vector.shape_cast %135 : vector<1xf32> to vector<1x1x1xf32>
    %137 = vector.extract %136[0, 0, 0] : f32 from vector<1x1x1xf32>
    %cst_36 = arith.constant 2.048000e+03 : f32
    %138 = arith.divf %137, %cst_36 : f32
    %139 = arith.mulf %133, %133 : vector<8x256xf32>
    %140 = vector.shape_cast %139 : vector<8x256xf32> to vector<1x8x256xf32>
    %cst_37 = arith.constant dense<0.000000e+00> : vector<1xf32>
    %141 = vector.multi_reduction <add>, %140, %cst_37 [1, 2] : vector<1x8x256xf32> to vector<1xf32>
    %142 = vector.shape_cast %141 : vector<1xf32> to vector<1x1x1xf32>
    %143 = vector.extract %142[0, 0, 0] : f32 from vector<1x1x1xf32>
    %cst_38 = arith.constant 2.048000e+03 : f32
    %144 = arith.divf %143, %cst_38 : f32
    %145 = arith.mulf %138, %138 : f32
    %146 = arith.subf %144, %145 : f32
    %cst_39 = arith.constant 0.000000e+00 : f32
    %147 = arith.maximumf %146, %cst_39 : f32
    %cst_40 = arith.constant 9.99999974E-6 : f32
    %148 = arith.addf %147, %cst_40 : f32
    %149 = math.rsqrt %148 : f32
    %150 = vector.broadcast %149 : f32 to vector<8x1xf32>
    %151 = arith.mulf %27, %150 : vector<8x1xf32>
    %152 = vector.broadcast %151 : vector<8x1xf32> to vector<8x256xf32>
    %153 = arith.mulf %133, %152 : vector<8x256xf32>
    %154 = vector.broadcast %138 : f32 to vector<8x1xf32>
    %155 = arith.mulf %154, %151 : vector<8x1xf32>
    %156 = arith.subf %28, %155 : vector<8x1xf32>
    %157 = vector.broadcast %156 : vector<8x1xf32> to vector<8x256xf32>
    %158 = arith.addf %153, %157 : vector<8x256xf32>
    %159 = vector.extract_strided_slice %132 {offsets = [0, 256], sizes = [8, 256], strides = [1, 1]} : vector<8x512xf32> to vector<8x256xf32>
    %160 = vector.shape_cast %159 : vector<8x256xf32> to vector<1x8x256xf32>
    %cst_41 = arith.constant dense<0.000000e+00> : vector<1xf32>
    %161 = vector.multi_reduction <add>, %160, %cst_41 [1, 2] : vector<1x8x256xf32> to vector<1xf32>
    %162 = vector.shape_cast %161 : vector<1xf32> to vector<1x1x1xf32>
    %163 = vector.extract %162[0, 0, 0] : f32 from vector<1x1x1xf32>
    %cst_42 = arith.constant 2.048000e+03 : f32
    %164 = arith.divf %163, %cst_42 : f32
    %165 = arith.mulf %159, %159 : vector<8x256xf32>
    %166 = vector.shape_cast %165 : vector<8x256xf32> to vector<1x8x256xf32>
    %cst_43 = arith.constant dense<0.000000e+00> : vector<1xf32>
    %167 = vector.multi_reduction <add>, %166, %cst_43 [1, 2] : vector<1x8x256xf32> to vector<1xf32>
    %168 = vector.shape_cast %167 : vector<1xf32> to vector<1x1x1xf32>
    %169 = vector.extract %168[0, 0, 0] : f32 from vector<1x1x1xf32>
    %cst_44 = arith.constant 2.048000e+03 : f32
    %170 = arith.divf %169, %cst_44 : f32
    %171 = arith.mulf %164, %164 : f32
    %172 = arith.subf %170, %171 : f32
    %cst_45 = arith.constant 0.000000e+00 : f32
    %173 = arith.maximumf %172, %cst_45 : f32
    %cst_46 = arith.constant 9.99999974E-6 : f32
    %174 = arith.addf %173, %cst_46 : f32
    %175 = math.rsqrt %174 : f32
    %176 = vector.broadcast %175 : f32 to vector<8x1xf32>
    %177 = arith.mulf %27, %176 : vector<8x1xf32>
    %178 = vector.broadcast %177 : vector<8x1xf32> to vector<8x256xf32>
    %179 = arith.mulf %159, %178 : vector<8x256xf32>
    %180 = vector.broadcast %164 : f32 to vector<8x1xf32>
    %181 = arith.mulf %180, %177 : vector<8x1xf32>
    %182 = arith.subf %28, %181 : vector<8x1xf32>
    %183 = vector.broadcast %182 : vector<8x1xf32> to vector<8x256xf32>
    %184 = arith.addf %179, %183 : vector<8x256xf32>
    %185 = tpu.concatenate %158, %184 in 1 : vector<8x256xf32>, vector<8x256xf32> -> vector<8x512xf32>
    %c0_47 = arith.constant 0 : index
    %c0_48 = arith.constant 0 : index
    %186 = vector.load %arg8[%c0_47, %c0_48] : memref<8x72xbf16, #tpu.memory_space<vmem>>, vector<8x72xbf16>
    %c17_i32_49 = arith.constant 17 : i32
    %187 = tpu.dynamic_rotate %185 by %c17_i32_49 dim 1 : vector<8x512xf32>, i32 -> vector<8x512xf32>
    %188 = vector.broadcast %21 : vector<1x512xf32> to vector<8x512xf32>
    %189 = arith.mulf %187, %188 : vector<8x512xf32>
    %190 = arith.truncf %189 : vector<8x512xf32> to vector<8x512xbf16>
    %c16_i32_50 = arith.constant 16 : i32
    %191 = tpu.dynamic_rotate %185 by %c16_i32_50 dim 1 : vector<8x512xf32>, i32 -> vector<8x512xf32>
    %192 = vector.broadcast %8 : vector<1x512xf32> to vector<8x512xf32>
    %193 = arith.mulf %191, %192 : vector<8x512xf32>
    %194 = arith.truncf %193 : vector<8x512xf32> to vector<8x512xbf16>
    %c15_i32_51 = arith.constant 15 : i32
    %195 = tpu.dynamic_rotate %185 by %c15_i32_51 dim 1 : vector<8x512xf32>, i32 -> vector<8x512xf32>
    %196 = vector.broadcast %22 : vector<1x512xf32> to vector<8x512xf32>
    %197 = arith.mulf %195, %196 : vector<8x512xf32>
    %198 = arith.truncf %197 : vector<8x512xf32> to vector<8x512xbf16>
    %c1_i32_52 = arith.constant 1 : i32
    %199 = tpu.dynamic_rotate %185 by %c1_i32_52 dim 1 : vector<8x512xf32>, i32 -> vector<8x512xf32>
    %200 = vector.broadcast %16 : vector<1x512xf32> to vector<8x512xf32>
    %201 = arith.mulf %199, %200 : vector<8x512xf32>
    %202 = arith.truncf %201 : vector<8x512xf32> to vector<8x512xbf16>
    %203 = arith.truncf %185 : vector<8x512xf32> to vector<8x512xbf16>
    %c511_i32_53 = arith.constant 511 : i32
    %204 = tpu.dynamic_rotate %185 by %c511_i32_53 dim 1 : vector<8x512xf32>, i32 -> vector<8x512xf32>
    %205 = vector.broadcast %20 : vector<1x512xf32> to vector<8x512xf32>
    %206 = arith.mulf %204, %205 : vector<8x512xf32>
    %207 = arith.truncf %206 : vector<8x512xf32> to vector<8x512xbf16>
    %c497_i32_54 = arith.constant 497 : i32
    %208 = tpu.dynamic_rotate %185 by %c497_i32_54 dim 1 : vector<8x512xf32>, i32 -> vector<8x512xf32>
    %209 = vector.broadcast %23 : vector<1x512xf32> to vector<8x512xf32>
    %210 = arith.mulf %208, %209 : vector<8x512xf32>
    %211 = arith.truncf %210 : vector<8x512xf32> to vector<8x512xbf16>
    %c496_i32_55 = arith.constant 496 : i32
    %212 = tpu.dynamic_rotate %185 by %c496_i32_55 dim 1 : vector<8x512xf32>, i32 -> vector<8x512xf32>
    %213 = vector.broadcast %12 : vector<1x512xf32> to vector<8x512xf32>
    %214 = arith.mulf %212, %213 : vector<8x512xf32>
    %215 = arith.truncf %214 : vector<8x512xf32> to vector<8x512xbf16>
    %c495_i32_56 = arith.constant 495 : i32
    %216 = tpu.dynamic_rotate %185 by %c495_i32_56 dim 1 : vector<8x512xf32>, i32 -> vector<8x512xf32>
    %217 = vector.broadcast %24 : vector<1x512xf32> to vector<8x512xf32>
    %218 = arith.mulf %216, %217 : vector<8x512xf32>
    %219 = arith.truncf %218 : vector<8x512xf32> to vector<8x512xbf16>
    %220 = tpu.concatenate %190, %194, %198, %202, %203, %207, %211, %215, %219 in 0 : vector<8x512xbf16>, vector<8x512xbf16>, vector<8x512xbf16>, vector<8x512xbf16>, vector<8x512xbf16>, vector<8x512xbf16>, vector<8x512xbf16>, vector<8x512xbf16>, vector<8x512xbf16> -> vector<72x512xbf16>
    %cst_57 = arith.constant dense<0.000000e+00> : vector<8x512xf32>
    %221 = tpu.matmul %186, %220, %cst_57 {dimension_numbers = #tpu.dot_dimension_numbers<[1], [0], [0], [1], [0, 0, 1, 1], [], []>} : vector<8x72xbf16>, vector<72x512xbf16>, vector<8x512xf32> -> vector<8x512xf32>
    %c0_58 = arith.constant 0 : index
    %c0_59 = arith.constant 0 : index
    %222 = vector.load %arg9[%c0_58, %c0_59] : memref<8x1xf32, #tpu.memory_space<vmem>>, vector<8x1xf32>
    %223 = vector.broadcast %222 : vector<8x1xf32> to vector<8x512xf32>
    %224 = arith.addf %221, %223 : vector<8x512xf32>
    %cst_60 = arith.constant 5.000000e-01 : f32
    %225 = vector.broadcast %cst_60 : f32 to vector<8x512xf32>
    %226 = arith.mulf %225, %224 : vector<8x512xf32>
    %cst_61 = arith.constant 1.41421354 : f32
    %227 = vector.broadcast %cst_61 : f32 to vector<8x512xf32>
    %228 = arith.divf %224, %227 : vector<8x512xf32>
    %229 = math.erf %228 : vector<8x512xf32>
    %cst_62 = arith.constant 1.000000e+00 : f32
    %230 = vector.broadcast %cst_62 : f32 to vector<8x512xf32>
    %231 = arith.addf %230, %229 : vector<8x512xf32>
    %232 = arith.mulf %226, %231 : vector<8x512xf32>
    %233 = vector.extract_strided_slice %232 {offsets = [0, 0], sizes = [8, 256], strides = [1, 1]} : vector<8x512xf32> to vector<8x256xf32>
    %c0_63 = arith.constant 0 : index
    %c0_64 = arith.constant 0 : index
    %c0_65 = arith.constant 0 : index
    %234 = vector.load %arg10[%c0_63, %c0_64, %c0_65] : memref<2x8x256xf32, #tpu.memory_space<vmem>>, vector<1x8x256xf32>
    %235 = vector.shape_cast %234 : vector<1x8x256xf32> to vector<8x256xf32>
    %236 = vector.shape_cast %233 : vector<8x256xf32> to vector<1x8x256xf32>
    tpu.vector_store %arg10[%c0_63, %c0_64, %c0_65], %236 {strides = array<i32>} : memref<2x8x256xf32, #tpu.memory_space<vmem>>, vector<1x8x256xf32>,
    %237 = vector.extract_strided_slice %232 {offsets = [0, 256], sizes = [8, 256], strides = [1, 1]} : vector<8x512xf32> to vector<8x256xf32>
    %c1_66 = arith.constant 1 : index
    %c0_67 = arith.constant 0 : index
    %c0_68 = arith.constant 0 : index
    %238 = vector.load %arg10[%c1_66, %c0_67, %c0_68] : memref<2x8x256xf32, #tpu.memory_space<vmem>>, vector<1x8x256xf32>
    %239 = vector.shape_cast %238 : vector<1x8x256xf32> to vector<8x256xf32>
    %240 = vector.shape_cast %237 : vector<8x256xf32> to vector<1x8x256xf32>
    tpu.vector_store %arg10[%c1_66, %c0_67, %c0_68], %240 {strides = array<i32>} : memref<2x8x256xf32, #tpu.memory_space<vmem>>, vector<1x8x256xf32>,
    return
  }
  func.func @transform_0(%arg0: i32) -> (i32, i32, i32) {
    %c0_i32 = arith.constant 0 : i32
    %c0_i32_0 = arith.constant 0 : i32
    %c0_i32_1 = arith.constant 0 : i32
    return %arg0, %c0_i32, %c0_i32_0 : i32, i32, i32
  }
  func.func @transform_1(%arg0: i32) -> (i32, i32) {
    %c0_i32 = arith.constant 0 : i32
    %c0_i32_0 = arith.constant 0 : i32
    %c0_i32_1 = arith.constant 0 : i32
    return %c0_i32, %c0_i32_0 : i32, i32
  }
  func.func @transform_2(%arg0: i32) -> (i32, i32) {
    %c0_i32 = arith.constant 0 : i32
    %c0_i32_0 = arith.constant 0 : i32
    %c0_i32_1 = arith.constant 0 : i32
    return %c0_i32, %c0_i32_0 : i32, i32
  }
  func.func @transform_3(%arg0: i32) -> (i32, i32) {
    %c0_i32 = arith.constant 0 : i32
    %c0_i32_0 = arith.constant 0 : i32
    %c0_i32_1 = arith.constant 0 : i32
    return %c0_i32, %c0_i32_0 : i32, i32
  }
  func.func @transform_4(%arg0: i32) -> (i32, i32) {
    %c0_i32 = arith.constant 0 : i32
    %c0_i32_0 = arith.constant 0 : i32
    %c0_i32_1 = arith.constant 0 : i32
    return %c0_i32, %c0_i32_0 : i32, i32
  }
  func.func @transform_5(%arg0: i32) -> (i32, i32) {
    %c0_i32 = arith.constant 0 : i32
    %c0_i32_0 = arith.constant 0 : i32
    %c0_i32_1 = arith.constant 0 : i32
    return %c0_i32, %c0_i32_0 : i32, i32
  }
  func.func @transform_6(%arg0: i32) -> (i32, i32) {
    %c0_i32 = arith.constant 0 : i32
    %c0_i32_0 = arith.constant 0 : i32
    %c0_i32_1 = arith.constant 0 : i32
    return %c0_i32, %c0_i32_0 : i32, i32
  }
  func.func @transform_7(%arg0: i32) -> (i32, i32) {
    %c0_i32 = arith.constant 0 : i32
    %c0_i32_0 = arith.constant 0 : i32
    %c0_i32_1 = arith.constant 0 : i32
    return %c0_i32, %c0_i32_0 : i32, i32
  }
  func.func @transform_8(%arg0: i32) -> (i32, i32) {
    %c0_i32 = arith.constant 0 : i32
    %c0_i32_0 = arith.constant 0 : i32
    %c0_i32_1 = arith.constant 0 : i32
    return %c0_i32, %c0_i32_0 : i32, i32
  }
  func.func @transform_9(%arg0: i32) -> (i32, i32, i32) {
    %c0_i32 = arith.constant 0 : i32
    %c0_i32_0 = arith.constant 0 : i32
    %c0_i32_1 = arith.constant 0 : i32
    return %arg0, %c0_i32, %c0_i32_0 : i32, i32, i32
  }
}

</mosaic_0001>

<llo_original>
// kernel: tpu_custom_call.1
$region0: #{tpu_custom_call.1}
  #allocation0 [shape = 'u32[]', space=smem, size = 0x4, offset = 0x4, fixed_abs, tag = 'smem constant byte address 0x4 - core index']
  #allocation1 [shape = 'u32[144,128]{1,0:T(1,128)}', space=vmem, size = 0x12000, scoped, tag = 'internal scratch']
  %s0 = inlined_call_operand.vmem [shape: f32[4,4,256], index: 0, kind: input, shape index: {}]
  %s1 = inlined_call_operand.vmem [shape: f32[4,1], index: 1, kind: input, shape index: {}]
  %s2 = inlined_call_operand.vmem [shape: f32[4,1], index: 2, kind: input, shape index: {}]
  %s3 = inlined_call_operand.vmem [shape: bf16[8,72], index: 3, kind: input, shape index: {}]
  %s4 = inlined_call_operand.vmem [shape: f32[8,1], index: 4, kind: input, shape index: {}]
  %s5 = inlined_call_operand.vmem [shape: f32[8,1], index: 5, kind: input, shape index: {}]
  %s6 = inlined_call_operand.vmem [shape: f32[8,1], index: 6, kind: input, shape index: {}]
  %s7 = inlined_call_operand.vmem [shape: bf16[8,72], index: 7, kind: input, shape index: {}]
  %s8 = inlined_call_operand.vmem [shape: f32[8,1], index: 8, kind: input, shape index: {}]
  %s9 = inlined_call_operand.hbm [shape: f32[4,8,256], index: 9, kind: output, shape index: {}]
  %s10 = sld [smem:[#allocation0]]
  $region69: #{tpu_custom_call.1} parent=0
    _
  %s12 = ssub.s32 1, %s10
  %s13 = scalar_select 0, %s12, %s10
  $region1: #{tpu_custom_call.1} parent=0
    #allocation2 [shape = 'u8[32768]{0}', space=vmem, size = 0x8000, scoped, tag = 'output window, operand 0']
    #allocation3 [shape = 's32[2]{0}', space=sflag, size = 0x8, scoped, tag = 'scoped memory for tpu_custom_call.1']
    %14 = vsyncpa [#allocation3], 0
    %s15 = scalar_lea.sflag [#allocation3], 1
    %16 = vsyncpa %s15, 0
    loop: start=0, step=1, limit=4
    $region2: #{tpu_custom_call.1} parent=1 // loop_pre_header
      _
    $region3: #{tpu_custom_call.1} parent=1 // loop_header
      %s18 = sphi 0, %s22
      %p19 = scmp.ge.s32.totalorder %s18, 4
      %s28 = sphi 0, %s30
      %s31 = sphi 0, %s28
      %s32 = sphi 0, %s31
      %s48 = sphi 0, %s32
      %s52 = sphi 0, %s52
      %s54 = sphi 0, %s52
      %s55 = sphi 0, %s54
      %s69 = sphi 0, %s55
      %s73 = sphi 0, %s73
      %s75 = sphi 0, %s73
      %s76 = sphi 0, %s75
      %s90 = sphi 0, %s76
      %s94 = sphi 0, %s94
      %s96 = sphi 0, %s94
      %s97 = sphi 0, %s96
      %s111 = sphi 0, %s97
      %s115 = sphi 0, %s115
      %s117 = sphi 0, %s115
      %s118 = sphi 0, %s117
      %s132 = sphi 0, %s118
      %s136 = sphi 0, %s136
      %s138 = sphi 0, %s136
      %s139 = sphi 0, %s138
      %s153 = sphi 0, %s139
      %s157 = sphi 0, %s157
      %s159 = sphi 0, %s157
      %s160 = sphi 0, %s159
      %s174 = sphi 0, %s160
      %s178 = sphi 0, %s178
      %s180 = sphi 0, %s178
      %s181 = sphi 0, %s180
      %s195 = sphi 0, %s181
      %s199 = sphi 0, %s199
      %s201 = sphi 0, %s199
      %s202 = sphi 0, %s201
      %s216 = sphi 0, %s202
      %s222 = sphi 0, %s224
      %s225 = sphi 0, %s222
      %s226 = sphi 0, %s225
      %s242 = sphi 0, %s226
    $region4: #{tpu_custom_call.1} parent=1 // loop_header_branch
      %21 = sbr.rel (%p19) target = $region8
    $region5: #{tpu_custom_call.1} parent=1 // loop_body
      %s23 = ssub.s32 %s18, 1
      %s24 = ssub.s32 %s18, 2
      %s25 = sadd.s32 %s18, 1
      %s26 = ssub.s32 %s18, %s25
      %p27 = scmp.eq.s32.totalorder %s26, 0
      %s29 = sadd.s32 %s28, 1
      %s30 = scalar_select %p27, %s28, %s29
      %p33 = pneg %p27
      %p34 = scmp.eq.s32.totalorder %s18, 1
      %p35 = por %p33, %p34
      %p36 = scmp.ne.s32.totalorder %s28, %s31
      %p37 = scmp.eq.s32.totalorder %s18, 0
      %p38 = por %p36, %p37
      %p39 = scmp.ne.s32.totalorder %s28, %s31
      %p40 = scmp.eq.s32.totalorder %s23, 1
      %p41 = por %p39, %p40
      %p42 = scmp.ne.s32.totalorder %s31, %s32
      %p43 = scmp.eq.s32.totalorder %s23, 0
      %p44 = por %p42, %p43
      %p45 = scmp.ne.s32.totalorder %s31, %s32
      %p46 = scmp.eq.s32.totalorder %s24, 1
      %p47 = por %p45, %p46
      %p49 = scmp.ne.s32.totalorder %s32, %s48
      %p50 = scmp.eq.s32.totalorder %s24, 0
      %p51 = por %p49, %p50
      %s53 = sadd.s32 %s52, 1
      %p56 = scmp.eq.s32.totalorder %s18, 1
      %p57 = scmp.ne.s32.totalorder %s52, %s54
      %p58 = scmp.eq.s32.totalorder %s18, 0
      %p59 = por %p57, %p58
      %p60 = scmp.ne.s32.totalorder %s52, %s54
      %p61 = scmp.eq.s32.totalorder %s23, 1
      %p62 = por %p60, %p61
      %p63 = scmp.ne.s32.totalorder %s54, %s55
      %p64 = scmp.eq.s32.totalorder %s23, 0
      %p65 = por %p63, %p64
      %p66 = scmp.ne.s32.totalorder %s54, %s55
      %p67 = scmp.eq.s32.totalorder %s24, 1
      %p68 = por %p66, %p67
      %p70 = scmp.ne.s32.totalorder %s55, %s69
      %p71 = scmp.eq.s32.totalorder %s24, 0
      %p72 = por %p70, %p71
      %s74 = sadd.s32 %s73, 1
      %p77 = scmp.eq.s32.totalorder %s18, 1
      %p78 = scmp.ne.s32.totalorder %s73, %s75
      %p79 = scmp.eq.s32.totalorder %s18, 0
      %p80 = por %p78, %p79
      %p81 = scmp.ne.s32.totalorder %s73, %s75
      %p82 = scmp.eq.s32.totalorder %s23, 1
      %p83 = por %p81, %p82
      %p84 = scmp.ne.s32.totalorder %s75, %s76
      %p85 = scmp.eq.s32.totalorder %s23, 0
      %p86 = por %p84, %p85
      %p87 = scmp.ne.s32.totalorder %s75, %s76
      %p88 = scmp.eq.s32.totalorder %s24, 1
      %p89 = por %p87, %p88
      %p91 = scmp.ne.s32.totalorder %s76, %s90
      %p92 = scmp.eq.s32.totalorder %s24, 0
      %p93 = por %p91, %p92
      %s95 = sadd.s32 %s94, 1
      %p98 = scmp.eq.s32.totalorder %s18, 1
      %p99 = scmp.ne.s32.totalorder %s94, %s96
      %p100 = scmp.eq.s32.totalorder %s18, 0
      %p101 = por %p99, %p100
      %p102 = scmp.ne.s32.totalorder %s94, %s96
      %p103 = scmp.eq.s32.totalorder %s23, 1
      %p104 = por %p102, %p103
      %p105 = scmp.ne.s32.totalorder %s96, %s97
      %p106 = scmp.eq.s32.totalorder %s23, 0
      %p107 = por %p105, %p106
      %p108 = scmp.ne.s32.totalorder %s96, %s97
      %p109 = scmp.eq.s32.totalorder %s24, 1
      %p110 = por %p108, %p109
      %p112 = scmp.ne.s32.totalorder %s97, %s111
      %p113 = scmp.eq.s32.totalorder %s24, 0
      %p114 = por %p112, %p113
      %s116 = sadd.s32 %s115, 1
      %p119 = scmp.eq.s32.totalorder %s18, 1
      %p120 = scmp.ne.s32.totalorder %s115, %s117
      %p121 = scmp.eq.s32.totalorder %s18, 0
      %p122 = por %p120, %p121
      %p123 = scmp.ne.s32.totalorder %s115, %s117
      %p124 = scmp.eq.s32.totalorder %s23, 1
      %p125 = por %p123, %p124
      %p126 = scmp.ne.s32.totalorder %s117, %s118
      %p127 = scmp.eq.s32.totalorder %s23, 0
      %p128 = por %p126, %p127
      %p129 = scmp.ne.s32.totalorder %s117, %s118
      %p130 = scmp.eq.s32.totalorder %s24, 1
      %p131 = por %p129, %p130
      %p133 = scmp.ne.s32.totalorder %s118, %s132
      %p134 = scmp.eq.s32.totalorder %s24, 0
      %p135 = por %p133, %p134
      %s137 = sadd.s32 %s136, 1
      %p140 = scmp.eq.s32.totalorder %s18, 1
      %p141 = scmp.ne.s32.totalorder %s136, %s138
      %p142 = scmp.eq.s32.totalorder %s18, 0
      %p143 = por %p141, %p142
      %p144 = scmp.ne.s32.totalorder %s136, %s138
      %p145 = scmp.eq.s32.totalorder %s23, 1
      %p146 = por %p144, %p145
      %p147 = scmp.ne.s32.totalorder %s138, %s139
      %p148 = scmp.eq.s32.totalorder %s23, 0
      %p149 = por %p147, %p148
      %p150 = scmp.ne.s32.totalorder %s138, %s139
      %p151 = scmp.eq.s32.totalorder %s24, 1
      %p152 = por %p150, %p151
      %p154 = scmp.ne.s32.totalorder %s139, %s153
      %p155 = scmp.eq.s32.totalorder %s24, 0
      %p156 = por %p154, %p155
      %s158 = sadd.s32 %s157, 1
      %p161 = scmp.eq.s32.totalorder %s18, 1
      %p162 = scmp.ne.s32.totalorder %s157, %s159
      %p163 = scmp.eq.s32.totalorder %s18, 0
      %p164 = por %p162, %p163
      %p165 = scmp.ne.s32.totalorder %s157, %s159
      %p166 = scmp.eq.s32.totalorder %s23, 1
      %p167 = por %p165, %p166
      %p168 = scmp.ne.s32.totalorder %s159, %s160
      %p169 = scmp.eq.s32.totalorder %s23, 0
      %p170 = por %p168, %p169
      %p171 = scmp.ne.s32.totalorder %s159, %s160
      %p172 = scmp.eq.s32.totalorder %s24, 1
      %p173 = por %p171, %p172
      %p175 = scmp.ne.s32.totalorder %s160, %s174
      %p176 = scmp.eq.s32.totalorder %s24, 0
      %p177 = por %p175, %p176
      %s179 = sadd.s32 %s178, 1
      %p182 = scmp.eq.s32.totalorder %s18, 1
      %p183 = scmp.ne.s32.totalorder %s178, %s180
      %p184 = scmp.eq.s32.totalorder %s18, 0
      %p185 = por %p183, %p184
      %p186 = scmp.ne.s32.totalorder %s178, %s180
      %p187 = scmp.eq.s32.totalorder %s23, 1
      %p188 = por %p186, %p187
      %p189 = scmp.ne.s32.totalorder %s180, %s181
      %p190 = scmp.eq.s32.totalorder %s23, 0
      %p191 = por %p189, %p190
      %p192 = scmp.ne.s32.totalorder %s180, %s181
      %p193 = scmp.eq.s32.totalorder %s24, 1
      %p194 = por %p192, %p193
      %p196 = scmp.ne.s32.totalorder %s181, %s195
      %p197 = scmp.eq.s32.totalorder %s24, 0
      %p198 = por %p196, %p197
      %s200 = sadd.s32 %s199, 1
      %p203 = scmp.eq.s32.totalorder %s18, 1
      %p204 = scmp.ne.s32.totalorder %s199, %s201
      %p205 = scmp.eq.s32.totalorder %s18, 0
      %p206 = por %p204, %p205
      %p207 = scmp.ne.s32.totalorder %s199, %s201
      %p208 = scmp.eq.s32.totalorder %s23, 1
      %p209 = por %p207, %p208
      %p210 = scmp.ne.s32.totalorder %s201, %s202
      %p211 = scmp.eq.s32.totalorder %s23, 0
      %p212 = por %p210, %p211
      %p213 = scmp.ne.s32.totalorder %s201, %s202
      %p214 = scmp.eq.s32.totalorder %s24, 1
      %p215 = por %p213, %p214
      %p217 = scmp.ne.s32.totalorder %s202, %s216
      %p218 = scmp.eq.s32.totalorder %s24, 0
      %p219 = por %p217, %p218
      %s220 = ssub.s32 %s18, %s25
      %p221 = scmp.eq.s32.totalorder %s220, 0
      %s223 = sadd.s32 %s222, 1
      %s224 = scalar_select %p221, %s222, %s223
      %p227 = pneg %p221
      %p228 = scmp.eq.s32.totalorder %s18, 1
      %p229 = por %p227, %p228
      %p230 = scmp.ne.s32.totalorder %s222, %s225
      %p231 = scmp.eq.s32.totalorder %s18, 0
      %p232 = por %p230, %p231
      %p233 = scmp.ne.s32.totalorder %s222, %s225
      %p234 = scmp.eq.s32.totalorder %s23, 1
      %p235 = por %p233, %p234
      %p236 = scmp.ne.s32.totalorder %s225, %s226
      %p237 = scmp.eq.s32.totalorder %s23, 0
      %p238 = por %p236, %p237
      %p239 = scmp.ne.s32.totalorder %s225, %s226
      %p240 = scmp.eq.s32.totalorder %s24, 1
      %p241 = por %p239, %p240
      %p243 = scmp.ne.s32.totalorder %s226, %s242
      %p244 = scmp.eq.s32.totalorder %s24, 0
      %p245 = por %p243, %p244
      %p246 = scmp.le.s32.totalorder 1, %s18
      %p247 = scmp.lt.s32.totalorder %s18, 3
      %p248 = pnand %p246, %p247
      %p249 = pneg %p248
      // Predicated region
      $region9: #{tpu_custom_call.1} parent=5 // pred_check
        _
      $region10: #{tpu_custom_call.1} parent=5 // pred_check_branch
        %251 = sbr.rel (%p248) target = $region12
      $region11: #{tpu_custom_call.1} parent=5 // pred_region
        %s252 = ssub.s32 %s18, 1
        // Predicated region
        $region13: #{tpu_custom_call.1} parent=11 // pred_check
          %p253 = pneg %p65
        $region14: #{tpu_custom_call.1} parent=11 // pred_check_branch
          %255 = sbr.rel (%p253) target = $region16
        $region15: #{tpu_custom_call.1} parent=11 // pred_region
          _
        $region16: #{tpu_custom_call.1} parent=11 // pred_fallthru
          _
        // Predicated region
        $region17: #{tpu_custom_call.1} parent=11 // pred_check
          %p256 = pneg %p86
        $region18: #{tpu_custom_call.1} parent=11 // pred_check_branch
          %258 = sbr.rel (%p256) target = $region20
        $region19: #{tpu_custom_call.1} parent=11 // pred_region
          _
        $region20: #{tpu_custom_call.1} parent=11 // pred_fallthru
          _
        // Predicated region
        $region21: #{tpu_custom_call.1} parent=11 // pred_check
          %p259 = pneg %p107
        $region22: #{tpu_custom_call.1} parent=11 // pred_check_branch
          %261 = sbr.rel (%p259) target = $region24
        $region23: #{tpu_custom_call.1} parent=11 // pred_region
          _
        $region24: #{tpu_custom_call.1} parent=11 // pred_fallthru
          _
        // Predicated region
        $region25: #{tpu_custom_call.1} parent=11 // pred_check
          %p262 = pneg %p128
        $region26: #{tpu_custom_call.1} parent=11 // pred_check_branch
          %264 = sbr.rel (%p262) target = $region28
        $region27: #{tpu_custom_call.1} parent=11 // pred_region
          _
        $region28: #{tpu_custom_call.1} parent=11 // pred_fallthru
          _
        // Predicated region
        $region29: #{tpu_custom_call.1} parent=11 // pred_check
          %p265 = pneg %p149
        $region30: #{tpu_custom_call.1} parent=11 // pred_check_branch
          %267 = sbr.rel (%p265) target = $region32
        $region31: #{tpu_custom_call.1} parent=11 // pred_region
          _
        $region32: #{tpu_custom_call.1} parent=11 // pred_fallthru
          _
        // Predicated region
        $region33: #{tpu_custom_call.1} parent=11 // pred_check
          %p268 = pneg %p170
        $region34: #{tpu_custom_call.1} parent=11 // pred_check_branch
          %270 = sbr.rel (%p268) target = $region36
        $region35: #{tpu_custom_call.1} parent=11 // pred_region
          _
        $region36: #{tpu_custom_call.1} parent=11 // pred_fallthru
          _
        // Predicated region
        $region37: #{tpu_custom_call.1} parent=11 // pred_check
          %p271 = pneg %p191
        $region38: #{tpu_custom_call.1} parent=11 // pred_check_branch
          %273 = sbr.rel (%p271) target = $region40
        $region39: #{tpu_custom_call.1} parent=11 // pred_region
          _
        $region40: #{tpu_custom_call.1} parent=11 // pred_fallthru
          _
        // Predicated region
        $region41: #{tpu_custom_call.1} parent=11 // pred_check
          %p274 = pneg %p212
        $region42: #{tpu_custom_call.1} parent=11 // pred_check_branch
          %276 = sbr.rel (%p274) target = $region44
        $region43: #{tpu_custom_call.1} parent=11 // pred_region
          _
        $region44: #{tpu_custom_call.1} parent=11 // pred_fallthru
          _
      $region12: #{tpu_custom_call.1} parent=5 // pred_fallthru
        _
      %p277 = scmp.lt.s32.totalorder %s18, 2
      // Predicated region
      $region45: #{tpu_custom_call.1} parent=5 // pred_check
        %p278 = pneg %p277
      $region46: #{tpu_custom_call.1} parent=5 // pred_check_branch
        %280 = sbr.rel (%p278) target = $region48
      $region47: #{tpu_custom_call.1} parent=5 // pred_region
        // Predicated region
        $region49: #{tpu_custom_call.1} parent=47 // pred_check
          %p281 = pneg %p38
        $region50: #{tpu_custom_call.1} parent=47 // pred_check_branch
          %283 = sbr.rel (%p281) target = $region52
        $region51: #{tpu_custom_call.1} parent=47 // pred_region
          %s284 = smul.u32 2, %s18
          %p285 = scmp.lt.s32.totalorder %s284, 3
          %s286 = scalar_select %p285, %s284, 3
          %s287 = smul.addr %s286, 2
          %s288 = smul.addr %s287, 4
          %s289 = scalar_lea.vmem %s0, %s288
          %s290 = smul.u32 2, %s18
        $region52: #{tpu_custom_call.1} parent=47 // pred_fallthru
          _
      $region48: #{tpu_custom_call.1} parent=5 // pred_fallthru
        _
      %p291 = scmp.le.s32.totalorder 1, %s18
      %p292 = scmp.lt.s32.totalorder %s18, 3
      %p293 = pnand %p291, %p292
      %p294 = pneg %p293
      // Predicated region
      $region53: #{tpu_custom_call.1} parent=5 // pred_check
        _
      $region54: #{tpu_custom_call.1} parent=5 // pred_check_branch
        %296 = sbr.rel (%p293) target = $region56
      $region55: #{tpu_custom_call.1} parent=5 // pred_region
        %s297 = ssub.s32 %s18, 1
        %s298 = smul.u32 2, %s23
        %p299 = scmp.lt.s32.totalorder %s298, 3
        %s300 = scalar_select %p299, %s298, 3
        %s301 = smul.addr %s300, 2
        %s302 = smul.addr %s301, 4
        %s303 = scalar_lea.vmem %s0, %s302
        %p304 = pneg %p44
        %p305 = pneg %p41
        %p306 = pneg %p65
        %p307 = pneg %p62
        %p308 = pneg %p86
        %p309 = pneg %p83
        %p310 = pneg %p107
        %p311 = pneg %p104
        %p312 = pneg %p128
        %p313 = pneg %p125
        %p314 = pneg %p149
        %p315 = pneg %p146
        %p316 = pneg %p170
        %p317 = pneg %p167
        %p318 = pneg %p191
        %p319 = pneg %p188
        %p320 = pneg %p212
        %p321 = pneg %p209
        %p322 = pneg %p238
        %p323 = pneg %p235
        %s324 = sand.u32 %s225, 1
        %s325 = scalar_lea.sflag [#allocation3], %s324
        %s326 = sand.u32 %s225, 1
        %s327 = smul.addr %s326, 32
        %s328 = scalar_lea.vmem [#allocation2], %s327
        %s329 = smul.u32 2, %s23
        %p330 = scmp.lt.s32.totalorder %s329, 3
        %s331 = scalar_select %p330, %s329, 3
        %s332 = smul.addr %s331, 2
        %s333 = smul.addr %s332, 4
        %s334 = scalar_lea.vmem %s0, %s333
        %s335 = smul.u32 2, %s23
        %s336 = smul.u32 2, %s23
        %v338 = vlaneseq
        %v339 = vand.u32 %v338, 127
        %v340 = vadd.s32 %v339, 128
        %v341 = vadd.s32 %v339, 256
        %v342 = vadd.s32 %v339, 384
        %v343 = vand.u32 %v339, 255
        %v344 = vand.u32 %v340, 255
        %v345 = vand.u32 %v341, 255
        %v346 = vand.u32 %v342, 255
        %v347 = vand.u32 %v343, 15
        %v348 = vand.u32 %v344, 15
        %v349 = vand.u32 %v345, 15
        %v350 = vand.u32 %v346, 15
        %vm351 = vcmp.ge.s32.totalorder %v343, 16
        %vm352 = vcmp.ge.s32.totalorder %v344, 16
        %vm353 = vcmp.ge.s32.totalorder %v345, 16
        %vm354 = vcmp.ge.s32.totalorder %v346, 16
        %v355 = vsel %vm351, 1, 0
        %v356 = vsel %vm352, 1, 0
        %v357 = vsel %vm353, 1, 0
        %v358 = vsel %vm354, 1, 0
        %v359 = vcvt.s32.f32 %v355
        %v360 = vcvt.s32.f32 %v356
        %v361 = vcvt.s32.f32 %v357
        %v362 = vcvt.s32.f32 %v358
        %vm363 = vcmp.lt.s32.totalorder %v343, 240
        %vm364 = vcmp.lt.s32.totalorder %v344, 240
        %vm365 = vcmp.lt.s32.totalorder %v345, 240
        %vm366 = vcmp.lt.s32.totalorder %v346, 240
        %v367 = vsel %vm363, 1, 0
        %v368 = vsel %vm364, 1, 0
        %v369 = vsel %vm365, 1, 0
        %v370 = vsel %vm366, 1, 0
        %v371 = vcvt.s32.f32 %v367
        %v372 = vcvt.s32.f32 %v368
        %v373 = vcvt.s32.f32 %v369
        %v374 = vcvt.s32.f32 %v370
        %vm375 = vcmp.ge.s32.totalorder %v347, 1
        %vm376 = vcmp.ge.s32.totalorder %v348, 1
        %vm377 = vcmp.ge.s32.totalorder %v349, 1
        %vm378 = vcmp.ge.s32.totalorder %v350, 1
        %v379 = vsel %vm375, 1, 0
        %v380 = vsel %vm376, 1, 0
        %v381 = vsel %vm377, 1, 0
        %v382 = vsel %vm378, 1, 0
        %v383 = vcvt.s32.f32 %v379
        %v384 = vcvt.s32.f32 %v380
        %v385 = vcvt.s32.f32 %v381
        %v386 = vcvt.s32.f32 %v382
        %vm387 = vcmp.le.s32.totalorder %v347, 14
        %vm388 = vcmp.le.s32.totalorder %v348, 14
        %vm389 = vcmp.le.s32.totalorder %v349, 14
        %vm390 = vcmp.le.s32.totalorder %v350, 14
        %v391 = vsel %vm387, 1, 0
        %v392 = vsel %vm388, 1, 0
        %v393 = vsel %vm389, 1, 0
        %v394 = vsel %vm390, 1, 0
        %v395 = vcvt.s32.f32 %v391
        %v396 = vcvt.s32.f32 %v392
        %v397 = vcvt.s32.f32 %v393
        %v398 = vcvt.s32.f32 %v394
        %v399 = vmul.f32 %v359, %v383
        %v400 = vmul.f32 %v360, %v384
        %v401 = vmul.f32 %v361, %v385
        %v402 = vmul.f32 %v362, %v386
        %v403 = vmul.f32 %v359, %v395
        %v404 = vmul.f32 %v360, %v396
        %v405 = vmul.f32 %v361, %v397
        %v406 = vmul.f32 %v362, %v398
        %v407 = vmul.f32 %v371, %v383
        %v408 = vmul.f32 %v372, %v384
        %v409 = vmul.f32 %v373, %v385
        %v410 = vmul.f32 %v374, %v386
        %v411 = vmul.f32 %v371, %v395
        %v412 = vmul.f32 %v372, %v396
        %v413 = vmul.f32 %v373, %v397
        %v414 = vmul.f32 %v374, %v398
        %v415 = vld [vmem:[%s1] sm:$0xf]
        %v416 = vld [vmem:[%s2] sm:$0xf]
        %v417 = vld [vmem:[%s5] sm:$0xff]
        %v418 = vld [vmem:[%s6] sm:$0xff]
        %v419 = vld [vmem:[%s334] sm:$0xff]
        %v421 = vcombine.high %v419, %v419
        %vm423 = vcmask 1043456
        %v424 = vsel %vm423, %v419, 0.0
        %v425 = vsel %vm423, %v421, 0.0
        %v426 = vadd.f32 %v424, %v425
        %427 = vadd.xlane.f32.xlu0 %v426
        %v428 = vpop.xlane.xlu0 %427
        %v429 = vrot.slane %v428, 4
        %v430 = vadd.f32 %v428, %v429
        %v431 = vrot.slane %v430, 2
        %v432 = vadd.f32 %v430, %v431
        %v433 = vrot.slane %v432, 1
        %v434 = vadd.f32 %v432, %v433
        %s435 = vtos %v434
        %v436 = vrcp.pop 1024.0
        %s437 = vtos %v436
        %s438 = smul.f32 %s435, %s437
        %v439 = vmul.f32 %v419, %v419
        %v441 = vcombine.high %v439, %v439
        %v443 = vsel %vm423, %v439, 0.0
        %v444 = vsel %vm423, %v441, 0.0
        %v445 = vadd.f32 %v443, %v444
        %446 = vadd.xlane.f32.xlu0 %v445
        %v447 = vpop.xlane.xlu0 %446
        %v448 = vrot.slane %v447, 4
        %v449 = vadd.f32 %v447, %v448
        %v450 = vrot.slane %v449, 2
        %v451 = vadd.f32 %v449, %v450
        %v452 = vrot.slane %v451, 1
        %v453 = vadd.f32 %v451, %v452
        %s454 = vtos %v453
        %v455 = vrcp.pop 1024.0
        %s456 = vtos %v455
        %s457 = smul.f32 %s454, %s456
        %s458 = smul.f32 %s438, %s438
        %s459 = ssub.f32 %s457, %s458
        %s460 = smax.f32 %s459, 0.0
        %s461 = sadd.f32 %s460, 1e-05
        %v462 = vstv %s461
        %v463 = vrsqrt.pop %v462
        %s464 = vtos %v463
        %v465 = vstv %s464
        %v466 = vmul.f32 %v415, %v465
        %468 = vset.pattern.permute.xlu0 0
        %469 = vperm.xlu0 %468, %v466
        %v470 = vpop.permute.xlu0 %469
        %v472 = vunpack.c.l.s4 839922192
        %v473 = vunpack.c.0.s8 %v472
        %v474 = vlaneseq
        %v475 = vshrl.u32 %v474, 7
        %v476 = vsub.s32 %v473, %v475
        %v477 = vrot.slane %v470, %v476
        %v479 = vmul.f32 %v419, %v477
        %v480 = vstv %s438
        %v481 = vmul.f32 %v480, %v466
        %v482 = vsub.f32 %v416, %v481
        %484 = vset.pattern.permute.xlu0 0
        %485 = vperm.xlu0 %484, %v482
        %v486 = vpop.permute.xlu0 %485
        %v488 = vunpack.c.l.s4 839922192
        %v489 = vunpack.c.0.s8 %v488
        %v490 = vlaneseq
        %v491 = vshrl.u32 %v490, 7
        %v492 = vsub.s32 %v489, %v491
        %v493 = vrot.slane %v486, %v492
        %v495 = vadd.f32 %v479, %v493
        %s496 = scalar_lea.vmem %s334, 8
        %v497 = vld [vmem:[%s496] sm:$0xff]
        %v499 = vcombine.high %v497, %v497
        %v501 = vsel %vm423, %v497, 0.0
        %v502 = vsel %vm423, %v499, 0.0
        %v503 = vadd.f32 %v501, %v502
        %504 = vadd.xlane.f32.xlu0 %v503
        %v505 = vpop.xlane.xlu0 %504
        %v506 = vrot.slane %v505, 4
        %v507 = vadd.f32 %v505, %v506
        %v508 = vrot.slane %v507, 2
        %v509 = vadd.f32 %v507, %v508
        %v510 = vrot.slane %v509, 1
        %v511 = vadd.f32 %v509, %v510
        %s512 = vtos %v511
        %v513 = vrcp.pop 1024.0
        %s514 = vtos %v513
        %s515 = smul.f32 %s512, %s514
        %v516 = vmul.f32 %v497, %v497
        %v518 = vcombine.high %v516, %v516
        %v520 = vsel %vm423, %v516, 0.0
        %v521 = vsel %vm423, %v518, 0.0
        %v522 = vadd.f32 %v520, %v521
        %523 = vadd.xlane.f32.xlu0 %v522
        %v524 = vpop.xlane.xlu0 %523
        %v525 = vrot.slane %v524, 4
        %v526 = vadd.f32 %v524, %v525
        %v527 = vrot.slane %v526, 2
        %v528 = vadd.f32 %v526, %v527
        %v529 = vrot.slane %v528, 1
        %v530 = vadd.f32 %v528, %v529
        %s531 = vtos %v530
        %v532 = vrcp.pop 1024.0
        %s533 = vtos %v532
        %s534 = smul.f32 %s531, %s533
        %s535 = smul.f32 %s515, %s515
        %s536 = ssub.f32 %s534, %s535
        %s537 = smax.f32 %s536, 0.0
        %s538 = sadd.f32 %s537, 1e-05
        %v539 = vstv %s538
        %v540 = vrsqrt.pop %v539
        %s541 = vtos %v540
        %v542 = vstv %s541
        %v543 = vmul.f32 %v415, %v542
        %545 = vset.pattern.permute.xlu0 0
        %546 = vperm.xlu0 %545, %v543
        %v547 = vpop.permute.xlu0 %546
        %v549 = vunpack.c.l.s4 839922192
        %v550 = vunpack.c.0.s8 %v549
        %v551 = vlaneseq
        %v552 = vshrl.u32 %v551, 7
        %v553 = vsub.s32 %v550, %v552
        %v554 = vrot.slane %v547, %v553
        %v556 = vmul.f32 %v497, %v554
        %v557 = vstv %s515
        %v558 = vmul.f32 %v557, %v543
        %v559 = vsub.f32 %v416, %v558
        %561 = vset.pattern.permute.xlu0 0
        %562 = vperm.xlu0 %561, %v559
        %v563 = vpop.permute.xlu0 %562
        %v565 = vunpack.c.l.s4 839922192
        %v566 = vunpack.c.0.s8 %v565
        %v567 = vlaneseq
        %v568 = vshrl.u32 %v567, 7
        %v569 = vsub.s32 %v566, %v568
        %v570 = vrot.slane %v563, %v569
        %v572 = vadd.f32 %v556, %v570
        %v574 = vcombine.high %v495, %v495
        %v577 = vcombine.high %v572, %v572
        %v579 = vld [vmem:[%s3] sm:$0xf]
        %v580 = vsel %vm423, %v495, 0.0
        %v581 = vsel %vm423, %v574, 0.0
        %v582 = vsel %vm423, %v572, 0.0
        %v583 = vsel %vm423, %v577, 0.0
        %584 = vrot.lane.b32.xlu0 %v580, 17
        %v585 = vpop.permute.xlu0 %584
        %586 = vrot.lane.b32.xlu0 %v581, 17
        %v587 = vpop.permute.xlu0 %586
        %588 = vrot.lane.b32.xlu0 %v582, 17
        %v589 = vpop.permute.xlu0 %588
        %590 = vrot.lane.b32.xlu0 %v583, 17
        %v591 = vpop.permute.xlu0 %590
        %vm592 = vcmp.lt.s32.totalorder %v339, 17
        %v593 = vsel %vm592, %v589, %v591
        %v594 = vsel %vm592, %v587, %v589
        %v595 = vsel %vm592, %v585, %v587
        %v596 = vsel %vm592, %v591, %v585
        %v597 = vmul.f32 %v596, %v399
        %v598 = vmul.f32 %v595, %v400
        %v599 = vmul.f32 %v594, %v401
        %v600 = vmul.f32 %v593, %v402
        %v601 = vpack.c.bf16 %v597, %v597
        %v602 = vpack.c.bf16 %v598, %v598
        %v603 = vpack.c.bf16 %v599, %v599
        %v604 = vpack.c.bf16 %v600, %v600
        %605 = vrot.lane.b32.xlu0 %v580, 16
        %v606 = vpop.permute.xlu0 %605
        %607 = vrot.lane.b32.xlu0 %v581, 16
        %v608 = vpop.permute.xlu0 %607
        %609 = vrot.lane.b32.xlu0 %v582, 16
        %v610 = vpop.permute.xlu0 %609
        %611 = vrot.lane.b32.xlu0 %v583, 16
        %v612 = vpop.permute.xlu0 %611
        %vm613 = vcmp.lt.s32.totalorder %v339, 16
        %v614 = vsel %vm613, %v610, %v612
        %v615 = vsel %vm613, %v608, %v610
        %v616 = vsel %vm613, %v606, %v608
        %v617 = vsel %vm613, %v612, %v606
        %v618 = vmul.f32 %v617, %v359
        %v619 = vmul.f32 %v616, %v360
        %v620 = vmul.f32 %v615, %v361
        %v621 = vmul.f32 %v614, %v362
        %v622 = vpack.c.bf16 %v618, %v618
        %v623 = vpack.c.bf16 %v619, %v619
        %v624 = vpack.c.bf16 %v620, %v620
        %v625 = vpack.c.bf16 %v621, %v621
        %626 = vrot.lane.b32.xlu0 %v580, 15
        %v627 = vpop.permute.xlu0 %626
        %628 = vrot.lane.b32.xlu0 %v581, 15
        %v629 = vpop.permute.xlu0 %628
        %630 = vrot.lane.b32.xlu0 %v582, 15
        %v631 = vpop.permute.xlu0 %630
        %632 = vrot.lane.b32.xlu0 %v583, 15
        %v633 = vpop.permute.xlu0 %632
        %vm634 = vcmp.lt.s32.totalorder %v339, 15
        %v635 = vsel %vm634, %v631, %v633
        %v636 = vsel %vm634, %v629, %v631
        %v637 = vsel %vm634, %v627, %v629
        %v638 = vsel %vm634, %v633, %v627
        %v639 = vmul.f32 %v638, %v403
        %v640 = vmul.f32 %v637, %v404
        %v641 = vmul.f32 %v636, %v405
        %v642 = vmul.f32 %v635, %v406
        %v643 = vpack.c.bf16 %v639, %v639
        %v644 = vpack.c.bf16 %v640, %v640
        %v645 = vpack.c.bf16 %v641, %v641
        %v646 = vpack.c.bf16 %v642, %v642
        %647 = vrot.lane.b32.xlu0 %v580, 1
        %v648 = vpop.permute.xlu0 %647
        %649 = vrot.lane.b32.xlu0 %v581, 1
        %v650 = vpop.permute.xlu0 %649
        %651 = vrot.lane.b32.xlu0 %v582, 1
        %v652 = vpop.permute.xlu0 %651
        %653 = vrot.lane.b32.xlu0 %v583, 1
        %v654 = vpop.permute.xlu0 %653
        %vm655 = vcmp.lt.s32.totalorder %v339, 1
        %v656 = vsel %vm655, %v652, %v654
        %v657 = vsel %vm655, %v650, %v652
        %v658 = vsel %vm655, %v648, %v650
        %v659 = vsel %vm655, %v654, %v648
        %v660 = vmul.f32 %v659, %v383
        %v661 = vmul.f32 %v658, %v384
        %v662 = vmul.f32 %v657, %v385
        %v663 = vmul.f32 %v656, %v386
        %v664 = vpack.c.bf16 %v660, %v660
        %v665 = vpack.c.bf16 %v661, %v661
        %v666 = vpack.c.bf16 %v662, %v662
        %v667 = vpack.c.bf16 %v663, %v663
        %v668 = vpack.c.bf16 %v580, %v580
        %v669 = vpack.c.bf16 %v581, %v581
        %v670 = vpack.c.bf16 %v582, %v582
        %v671 = vpack.c.bf16 %v583, %v583
        %672 = vrot.lane.b32.xlu0 %v580, 127
        %v673 = vpop.permute.xlu0 %672
        %674 = vrot.lane.b32.xlu0 %v581, 127
        %v675 = vpop.permute.xlu0 %674
        %676 = vrot.lane.b32.xlu0 %v582, 127
        %v677 = vpop.permute.xlu0 %676
        %678 = vrot.lane.b32.xlu0 %v583, 127
        %v679 = vpop.permute.xlu0 %678
        %vm680 = vcmp.lt.s32.totalorder %v339, 127
        %v681 = vsel %vm680, %v677, %v679
        %v682 = vsel %vm680, %v675, %v677
        %v683 = vsel %vm680, %v673, %v675
        %v684 = vsel %vm680, %v679, %v673
        %v685 = vmul.f32 %v683, %v395
        %v686 = vmul.f32 %v682, %v396
        %v687 = vmul.f32 %v681, %v397
        %v688 = vmul.f32 %v684, %v398
        %v689 = vpack.c.bf16 %v685, %v685
        %v690 = vpack.c.bf16 %v686, %v686
        %v691 = vpack.c.bf16 %v687, %v687
        %v692 = vpack.c.bf16 %v688, %v688
        %693 = vrot.lane.b32.xlu0 %v580, 113
        %v694 = vpop.permute.xlu0 %693
        %695 = vrot.lane.b32.xlu0 %v581, 113
        %v696 = vpop.permute.xlu0 %695
        %697 = vrot.lane.b32.xlu0 %v582, 113
        %v698 = vpop.permute.xlu0 %697
        %699 = vrot.lane.b32.xlu0 %v583, 113
        %v700 = vpop.permute.xlu0 %699
        %vm701 = vcmp.lt.s32.totalorder %v339, 113
        %v702 = vsel %vm701, %v698, %v700
        %v703 = vsel %vm701, %v696, %v698
        %v704 = vsel %vm701, %v694, %v696
        %v705 = vsel %vm701, %v700, %v694
        %v706 = vmul.f32 %v704, %v407
        %v707 = vmul.f32 %v703, %v408
        %v708 = vmul.f32 %v702, %v409
        %v709 = vmul.f32 %v705, %v410
        %v710 = vpack.c.bf16 %v706, %v706
        %v711 = vpack.c.bf16 %v707, %v707
        %v712 = vpack.c.bf16 %v708, %v708
        %v713 = vpack.c.bf16 %v709, %v709
        %714 = vrot.lane.b32.xlu0 %v580, 112
        %v715 = vpop.permute.xlu0 %714
        %716 = vrot.lane.b32.xlu0 %v581, 112
        %v717 = vpop.permute.xlu0 %716
        %718 = vrot.lane.b32.xlu0 %v582, 112
        %v719 = vpop.permute.xlu0 %718
        %720 = vrot.lane.b32.xlu0 %v583, 112
        %v721 = vpop.permute.xlu0 %720
        %vm722 = vcmp.lt.s32.totalorder %v339, 112
        %v723 = vsel %vm722, %v719, %v721
        %v724 = vsel %vm722, %v717, %v719
        %v725 = vsel %vm722, %v715, %v717
        %v726 = vsel %vm722, %v721, %v715
        %v727 = vmul.f32 %v725, %v371
        %v728 = vmul.f32 %v724, %v372
        %v729 = vmul.f32 %v723, %v373
        %v730 = vmul.f32 %v726, %v374
        %v731 = vpack.c.bf16 %v727, %v727
        %v732 = vpack.c.bf16 %v728, %v728
        %v733 = vpack.c.bf16 %v729, %v729
        %v734 = vpack.c.bf16 %v730, %v730
        %735 = vrot.lane.b32.xlu0 %v580, 111
        %v736 = vpop.permute.xlu0 %735
        %737 = vrot.lane.b32.xlu0 %v581, 111
        %v738 = vpop.permute.xlu0 %737
        %739 = vrot.lane.b32.xlu0 %v582, 111
        %v740 = vpop.permute.xlu0 %739
        %741 = vrot.lane.b32.xlu0 %v583, 111
        %v742 = vpop.permute.xlu0 %741
        %vm743 = vcmp.lt.s32.totalorder %v339, 111
        %v744 = vsel %vm743, %v740, %v742
        %v745 = vsel %vm743, %v738, %v740
        %v746 = vsel %vm743, %v736, %v738
        %v747 = vsel %vm743, %v742, %v736
        %v748 = vmul.f32 %v746, %v411
        %v749 = vmul.f32 %v745, %v412
        %v750 = vmul.f32 %v744, %v413
        %v751 = vmul.f32 %v747, %v414
        %v752 = vpack.c.bf16 %v748, %v748
        %v753 = vpack.c.bf16 %v749, %v749
        %v754 = vpack.c.bf16 %v750, %v750
        %v755 = vpack.c.bf16 %v751, %v751
        %v760 = vrot.slane %v622, 4
        %v761 = vrot.slane %v623, 4
        %v762 = vrot.slane %v624, 4
        %v763 = vrot.slane %v625, 4
        %v768 = vrot.slane %v664, 4
        %v769 = vrot.slane %v665, 4
        %v770 = vrot.slane %v666, 4
        %v771 = vrot.slane %v667, 4
        %v776 = vrot.slane %v689, 4
        %v777 = vrot.slane %v690, 4
        %v778 = vrot.slane %v691, 4
        %v779 = vrot.slane %v692, 4
        %v784 = vrot.slane %v731, 4
        %v785 = vrot.slane %v732, 4
        %v786 = vrot.slane %v733, 4
        %v787 = vrot.slane %v734, 4
        %v790 = vsel %vm423, %v601, %v760
        %v794 = vsel %vm423, %v602, %v761
        %v798 = vsel %vm423, %v603, %v762
        %v802 = vsel %vm423, %v604, %v763
        %v806 = vsel %vm423, %v643, %v768
        %v810 = vsel %vm423, %v644, %v769
        %v814 = vsel %vm423, %v645, %v770
        %v818 = vsel %vm423, %v646, %v771
        %v822 = vsel %vm423, %v668, %v776
        %v826 = vsel %vm423, %v669, %v777
        %v830 = vsel %vm423, %v670, %v778
        %v834 = vsel %vm423, %v671, %v779
        %v838 = vsel %vm423, %v710, %v784
        %v842 = vsel %vm423, %v711, %v785
        %v846 = vsel %vm423, %v712, %v786
        %v850 = vsel %vm423, %v713, %v787
        %v852 = vld [vmem:[%s4] sm:$0xff]
        %854 = vset.pattern.permute.xlu0 0
        %855 = vperm.xlu0 %854, %v852
        %v856 = vpop.permute.xlu0 %855
        %vm858 = vcmask 588800
        %v860 = vsel %vm858, %v579, 0
        %v863 = vsel %vm423, %v752, 0
        %v866 = vsel %vm423, %v753, 0
        %v869 = vsel %vm423, %v754, 0
        %v872 = vsel %vm423, %v755, 0
        %874 = vmatprep.subr.bf16.mxu0 0
        %875 = vmatpush1.bf16.msra.mxu0 0
        %876 = vmatprep.subr.bf16.mxu0 0
        %877 = vmatpush1.bf16.msra.mxu0 0
        %878 = vmatprep.subr.bf16.mxu0 0
        %879 = vmatpush1.bf16.msra.mxu0 0
        %880 = vmatprep.subr.bf16.mxu0 %v866
        %881 = vmatpush1.bf16.msra.mxu0 %v863
        %882 = vmatprep.subr.bf16.mxu0 %v842
        %883 = vmatpush1.bf16.msra.mxu0 %v838
        %884 = vmatprep.subr.bf16.mxu0 %v826
        %885 = vmatpush1.bf16.msra.mxu0 %v822
        %886 = vmatprep.subr.bf16.mxu0 %v810
        %887 = vmatpush1.bf16.msra.mxu0 %v806
        %888 = vmatprep.subr.bf16.mxu0 %v794
        %889 = vmatpush1.bf16.msra.mxu0 %v790
        %890 = vmatprep.subr.bf16.mxu0 0
        %891 = vmatpush2.bf16.msra.mxu0 0
        %892 = vmatprep.subr.bf16.mxu0 0
        %893 = vmatpush2.bf16.msra.mxu0 0
        %894 = vmatprep.subr.bf16.mxu0 0
        %895 = vmatpush2.bf16.msra.mxu0 0
        %896 = vmatprep.subr.bf16.mxu0 0
        %897 = vmatpush2.bf16.msra.mxu0 0
        %898 = vmatprep.subr.bf16.mxu0 0
        %899 = vmatpush2.bf16.msra.mxu0 0
        %900 = vmatprep.subr.bf16.mxu0 0
        %901 = vmatpush2.bf16.msra.mxu0 0
        %902 = vmatprep.subr.bf16.mxu0 0
        %903 = vmatpush2.bf16.msra.mxu0 0
        %904 = vmatprep.subr.bf16.mxu0 0
        %905 = vmatpush2.bf16.msra.mxu0 0
        %906 = vmatprep.mubr.bf16.mxu0 0
        %907 = vmatmul.mubr.bf16.gmra.mxu0 %v860
        %v908 = vpop.f32.mrf.mxu0
        %v909 = vadd.f32 %v856, %v908
        %v910 = vpop.f32.mrf.mxu0
        %v911 = vadd.f32 %v856, %v910
        %v912 = vpop.f32.mrf.mxu0
        %v913 = vpop.f32.mrf.mxu0
        %914 = vdwg.mxu0
        %915 = vmatprep.subr.bf16.mxu0 0
        %916 = vmatpush1.bf16.msra.mxu0 0
        %917 = vmatprep.subr.bf16.mxu0 0
        %918 = vmatpush1.bf16.msra.mxu0 0
        %919 = vmatprep.subr.bf16.mxu0 0
        %920 = vmatpush1.bf16.msra.mxu0 0
        %921 = vmatprep.subr.bf16.mxu0 %v872
        %922 = vmatpush1.bf16.msra.mxu0 %v869
        %923 = vmatprep.subr.bf16.mxu0 %v850
        %924 = vmatpush1.bf16.msra.mxu0 %v846
        %925 = vmatprep.subr.bf16.mxu0 %v834
        %926 = vmatpush1.bf16.msra.mxu0 %v830
        %927 = vmatprep.subr.bf16.mxu0 %v818
        %928 = vmatpush1.bf16.msra.mxu0 %v814
        %929 = vmatprep.subr.bf16.mxu0 %v802
        %930 = vmatpush1.bf16.msra.mxu0 %v798
        %931 = vmatprep.subr.bf16.mxu0 0
        %932 = vmatpush2.bf16.msra.mxu0 0
        %933 = vmatprep.subr.bf16.mxu0 0
        %934 = vmatpush2.bf16.msra.mxu0 0
        %935 = vmatprep.subr.bf16.mxu0 0
        %936 = vmatpush2.bf16.msra.mxu0 0
        %937 = vmatprep.subr.bf16.mxu0 0
        %938 = vmatpush2.bf16.msra.mxu0 0
        %939 = vmatprep.subr.bf16.mxu0 0
        %940 = vmatpush2.bf16.msra.mxu0 0
        %941 = vmatprep.subr.bf16.mxu0 0
        %942 = vmatpush2.bf16.msra.mxu0 0
        %943 = vmatprep.subr.bf16.mxu0 0
        %944 = vmatpush2.bf16.msra.mxu0 0
        %945 = vmatprep.subr.bf16.mxu0 0
        %946 = vmatpush2.bf16.msra.mxu0 0
        %947 = vmatprep.mubr.bf16.mxu0 0
        %948 = vmatmul.mubr.bf16.gmra.mxu0 %v860
        %v949 = vpop.f32.mrf.mxu0
        %v950 = vadd.f32 %v856, %v949
        %v951 = vpop.f32.mrf.mxu0
        %v952 = vadd.f32 %v856, %v951
        %v953 = vpop.f32.mrf.mxu0
        %v954 = vpop.f32.mrf.mxu0
        %955 = vdwg.mxu0
        %v956 = vmul.f32 %v909, 0.5
        %v957 = vmul.f32 %v911, 0.5
        %v958 = vmul.f32 %v950, 0.5
        %v959 = vmul.f32 %v952, 0.5
        %v960 = vrcp.pop 1.4142135
        %v961 = vmul.f32 %v909, %v960
        %v962 = vmul.f32 %v911, %v960
        %v963 = vmul.f32 %v950, %v960
        %v964 = vmul.f32 %v952, %v960
        %v965 = verf.f32.pop %v961
        %v966 = verf.f32.pop %v962
        %v967 = verf.f32.pop %v963
        %v968 = verf.f32.pop %v964
        %v969 = vadd.f32 %v965, 1.0
        %v970 = vadd.f32 %v966, 1.0
        %v971 = vadd.f32 %v967, 1.0
        %v972 = vadd.f32 %v968, 1.0
        %v973 = vmul.f32 %v956, %v969
        %v974 = vmul.f32 %v957, %v970
        %v975 = vmul.f32 %v958, %v971
        %v976 = vmul.f32 %v959, %v972
        %v977 = vadd.f32 %v973, %v974
        %978 = vadd.xlane.f32.xlu0 %v977
        %v979 = vpop.xlane.xlu0 %978
        %v980 = vrot.slane %v979, 4
        %v981 = vadd.f32 %v979, %v980
        %v982 = vrot.slane %v981, 2
        %v983 = vadd.f32 %v981, %v982
        %v984 = vrot.slane %v983, 1
        %v985 = vadd.f32 %v983, %v984
        %s986 = vtos %v985
        %v987 = vrcp.pop 2048.0
        %s988 = vtos %v987
        %s989 = smul.f32 %s986, %s988
        %v990 = vmul.f32 %v973, %v973
        %v991 = vmul.f32 %v974, %v974
        %v992 = vadd.f32 %v990, %v991
        %993 = vadd.xlane.f32.xlu0 %v992
        %v994 = vpop.xlane.xlu0 %993
        %v995 = vrot.slane %v994, 4
        %v996 = vadd.f32 %v994, %v995
        %v997 = vrot.slane %v996, 2
        %v998 = vadd.f32 %v996, %v997
        %v999 = vrot.slane %v998, 1
        %v1000 = vadd.f32 %v998, %v999
        %s1001 = vtos %v1000
        %v1002 = vrcp.pop 2048.0
        %s1003 = vtos %v1002
        %s1004 = smul.f32 %s1001, %s1003
        %s1005 = smul.f32 %s989, %s989
        %s1006 = ssub.f32 %s1004, %s1005
        %s1007 = smax.f32 %s1006, 0.0
        %s1008 = sadd.f32 %s1007, 1e-05
        %v1009 = vstv %s1008
        %v1010 = vrsqrt.pop %v1009
        %s1011 = vtos %v1010
        %v1012 = vstv %s1011
        %v1013 = vmul.f32 %v417, %v1012
        %1015 = vset.pattern.permute.xlu0 0
        %1016 = vperm.xlu0 %1015, %v1013
        %v1017 = vpop.permute.xlu0 %1016
        %v1019 = vmul.f32 %v973, %v1017
        %v1020 = vmul.f32 %v974, %v1017
        %v1021 = vstv %s989
        %v1022 = vmul.f32 %v1021, %v1013
        %v1023 = vsub.f32 %v418, %v1022
        %1025 = vset.pattern.permute.xlu0 0
        %1026 = vperm.xlu0 %1025, %v1023
        %v1027 = vpop.permute.xlu0 %1026
        %v1029 = vadd.f32 %v1019, %v1027
        %v1030 = vadd.f32 %v1020, %v1027
        %v1031 = vadd.f32 %v975, %v976
        %1032 = vadd.xlane.f32.xlu0 %v1031
        %v1033 = vpop.xlane.xlu0 %1032
        %v1034 = vrot.slane %v1033, 4
        %v1035 = vadd.f32 %v1033, %v1034
        %v1036 = vrot.slane %v1035, 2
        %v1037 = vadd.f32 %v1035, %v1036
        %v1038 = vrot.slane %v1037, 1
        %v1039 = vadd.f32 %v1037, %v1038
        %s1040 = vtos %v1039
        %v1041 = vrcp.pop 2048.0
        %s1042 = vtos %v1041
        %s1043 = smul.f32 %s1040, %s1042
        %v1044 = vmul.f32 %v975, %v975
        %v1045 = vmul.f32 %v976, %v976
        %v1046 = vadd.f32 %v1044, %v1045
        %1047 = vadd.xlane.f32.xlu0 %v1046
        %v1048 = vpop.xlane.xlu0 %1047
        %v1049 = vrot.slane %v1048, 4
        %v1050 = vadd.f32 %v1048, %v1049
        %v1051 = vrot.slane %v1050, 2
        %v1052 = vadd.f32 %v1050, %v1051
        %v1053 = vrot.slane %v1052, 1
        %v1054 = vadd.f32 %v1052, %v1053
        %s1055 = vtos %v1054
        %v1056 = vrcp.pop 2048.0
        %s1057 = vtos %v1056
        %s1058 = smul.f32 %s1055, %s1057
        %s1059 = smul.f32 %s1043, %s1043
        %s1060 = ssub.f32 %s1058, %s1059
        %s1061 = smax.f32 %s1060, 0.0
        %s1062 = sadd.f32 %s1061, 1e-05
        %v1063 = vstv %s1062
        %v1064 = vrsqrt.pop %v1063
        %s1065 = vtos %v1064
        %v1066 = vstv %s1065
        %v1067 = vmul.f32 %v417, %v1066
        %1069 = vset.pattern.permute.xlu0 0
        %1070 = vperm.xlu0 %1069, %v1067
        %v1071 = vpop.permute.xlu0 %1070
        %v1073 = vmul.f32 %v975, %v1071
        %v1074 = vmul.f32 %v976, %v1071
        %v1075 = vstv %s1043
        %v1076 = vmul.f32 %v1075, %v1067
        %v1077 = vsub.f32 %v418, %v1076
        %1079 = vset.pattern.permute.xlu0 0
        %1080 = vperm.xlu0 %1079, %v1077
        %v1081 = vpop.permute.xlu0 %1080
        %v1083 = vadd.f32 %v1073, %v1081
        %v1084 = vadd.f32 %v1074, %v1081
        %v1085 = vld [vmem:[%s7] sm:$0xf]
        %1086 = vrot.lane.b32.xlu0 %v1029, 17
        %v1087 = vpop.permute.xlu0 %1086
        %1088 = vrot.lane.b32.xlu0 %v1030, 17
        %v1089 = vpop.permute.xlu0 %1088
        %1090 = vrot.lane.b32.xlu0 %v1083, 17
        %v1091 = vpop.permute.xlu0 %1090
        %1092 = vrot.lane.b32.xlu0 %v1084, 17
        %v1093 = vpop.permute.xlu0 %1092
        %v1094 = vsel %vm592, %v1091, %v1093
        %v1095 = vsel %vm592, %v1089, %v1091
        %v1096 = vsel %vm592, %v1087, %v1089
        %v1097 = vsel %vm592, %v1093, %v1087
        %v1098 = vmul.f32 %v1097, %v399
        %v1099 = vmul.f32 %v1096, %v400
        %v1100 = vmul.f32 %v1095, %v401
        %v1101 = vmul.f32 %v1094, %v402
        %v1102 = vpack.c.bf16 %v1098, %v1098
        %v1103 = vpack.c.bf16 %v1099, %v1099
        %v1104 = vpack.c.bf16 %v1100, %v1100
        %v1105 = vpack.c.bf16 %v1101, %v1101
        %1106 = vrot.lane.b32.xlu0 %v1029, 16
        %v1107 = vpop.permute.xlu0 %1106
        %1108 = vrot.lane.b32.xlu0 %v1030, 16
        %v1109 = vpop.permute.xlu0 %1108
        %1110 = vrot.lane.b32.xlu0 %v1083, 16
        %v1111 = vpop.permute.xlu0 %1110
        %1112 = vrot.lane.b32.xlu0 %v1084, 16
        %v1113 = vpop.permute.xlu0 %1112
        %v1114 = vsel %vm613, %v1111, %v1113
        %v1115 = vsel %vm613, %v1109, %v1111
        %v1116 = vsel %vm613, %v1107, %v1109
        %v1117 = vsel %vm613, %v1113, %v1107
        %v1118 = vmul.f32 %v1117, %v359
        %v1119 = vmul.f32 %v1116, %v360
        %v1120 = vmul.f32 %v1115, %v361
        %v1121 = vmul.f32 %v1114, %v362
        %v1122 = vpack.c.bf16 %v1118, %v1118
        %v1123 = vpack.c.bf16 %v1119, %v1119
        %v1124 = vpack.c.bf16 %v1120, %v1120
        %v1125 = vpack.c.bf16 %v1121, %v1121
        %1126 = vrot.lane.b32.xlu0 %v1029, 15
        %v1127 = vpop.permute.xlu0 %1126
        %1128 = vrot.lane.b32.xlu0 %v1030, 15
        %v1129 = vpop.permute.xlu0 %1128
        %1130 = vrot.lane.b32.xlu0 %v1083, 15
        %v1131 = vpop.permute.xlu0 %1130
        %1132 = vrot.lane.b32.xlu0 %v1084, 15
        %v1133 = vpop.permute.xlu0 %1132
        %v1134 = vsel %vm634, %v1131, %v1133
        %v1135 = vsel %vm634, %v1129, %v1131
        %v1136 = vsel %vm634, %v1127, %v1129
        %v1137 = vsel %vm634, %v1133, %v1127
        %v1138 = vmul.f32 %v1137, %v403
        %v1139 = vmul.f32 %v1136, %v404
        %v1140 = vmul.f32 %v1135, %v405
        %v1141 = vmul.f32 %v1134, %v406
        %v1142 = vpack.c.bf16 %v1138, %v1138
        %v1143 = vpack.c.bf16 %v1139, %v1139
        %v1144 = vpack.c.bf16 %v1140, %v1140
        %v1145 = vpack.c.bf16 %v1141, %v1141
        %1146 = vrot.lane.b32.xlu0 %v1029, 1
        %v1147 = vpop.permute.xlu0 %1146
        %1148 = vrot.lane.b32.xlu0 %v1030, 1
        %v1149 = vpop.permute.xlu0 %1148
        %1150 = vrot.lane.b32.xlu0 %v1083, 1
        %v1151 = vpop.permute.xlu0 %1150
        %1152 = vrot.lane.b32.xlu0 %v1084, 1
        %v1153 = vpop.permute.xlu0 %1152
        %v1154 = vsel %vm655, %v1151, %v1153
        %v1155 = vsel %vm655, %v1149, %v1151
        %v1156 = vsel %vm655, %v1147, %v1149
        %v1157 = vsel %vm655, %v1153, %v1147
        %v1158 = vmul.f32 %v1157, %v383
        %v1159 = vmul.f32 %v1156, %v384
        %v1160 = vmul.f32 %v1155, %v385
        %v1161 = vmul.f32 %v1154, %v386
        %v1162 = vpack.c.bf16 %v1158, %v1158
        %v1163 = vpack.c.bf16 %v1159, %v1159
        %v1164 = vpack.c.bf16 %v1160, %v1160
        %v1165 = vpack.c.bf16 %v1161, %v1161
        %v1166 = vpack.c.bf16 %v1029, %v1029
        %v1167 = vpack.c.bf16 %v1030, %v1030
        %v1168 = vpack.c.bf16 %v1083, %v1083
        %v1169 = vpack.c.bf16 %v1084, %v1084
        %1170 = vrot.lane.b32.xlu0 %v1029, 127
        %v1171 = vpop.permute.xlu0 %1170
        %1172 = vrot.lane.b32.xlu0 %v1030, 127
        %v1173 = vpop.permute.xlu0 %1172
        %1174 = vrot.lane.b32.xlu0 %v1083, 127
        %v1175 = vpop.permute.xlu0 %1174
        %1176 = vrot.lane.b32.xlu0 %v1084, 127
        %v1177 = vpop.permute.xlu0 %1176
        %v1178 = vsel %vm680, %v1175, %v1177
        %v1179 = vsel %vm680, %v1173, %v1175
        %v1180 = vsel %vm680, %v1171, %v1173
        %v1181 = vsel %vm680, %v1177, %v1171
        %v1182 = vmul.f32 %v1180, %v395
        %v1183 = vmul.f32 %v1179, %v396
        %v1184 = vmul.f32 %v1178, %v397
        %v1185 = vmul.f32 %v1181, %v398
        %v1186 = vpack.c.bf16 %v1182, %v1182
        %v1187 = vpack.c.bf16 %v1183, %v1183
        %v1188 = vpack.c.bf16 %v1184, %v1184
        %v1189 = vpack.c.bf16 %v1185, %v1185
        %1190 = vrot.lane.b32.xlu0 %v1029, 113
        %v1191 = vpop.permute.xlu0 %1190
        %1192 = vrot.lane.b32.xlu0 %v1030, 113
        %v1193 = vpop.permute.xlu0 %1192
        %1194 = vrot.lane.b32.xlu0 %v1083, 113
        %v1195 = vpop.permute.xlu0 %1194
        %1196 = vrot.lane.b32.xlu0 %v1084, 113
        %v1197 = vpop.permute.xlu0 %1196
        %v1198 = vsel %vm701, %v1195, %v1197
        %v1199 = vsel %vm701, %v1193, %v1195
        %v1200 = vsel %vm701, %v1191, %v1193
        %v1201 = vsel %vm701, %v1197, %v1191
        %v1202 = vmul.f32 %v1200, %v407
        %v1203 = vmul.f32 %v1199, %v408
        %v1204 = vmul.f32 %v1198, %v409
        %v1205 = vmul.f32 %v1201, %v410
        %v1206 = vpack.c.bf16 %v1202, %v1202
        %v1207 = vpack.c.bf16 %v1203, %v1203
        %v1208 = vpack.c.bf16 %v1204, %v1204
        %v1209 = vpack.c.bf16 %v1205, %v1205
        %1210 = vrot.lane.b32.xlu0 %v1029, 112
        %v1211 = vpop.permute.xlu0 %1210
        %1212 = vrot.lane.b32.xlu0 %v1030, 112
        %v1213 = vpop.permute.xlu0 %1212
        %1214 = vrot.lane.b32.xlu0 %v1083, 112
        %v1215 = vpop.permute.xlu0 %1214
        %1216 = vrot.lane.b32.xlu0 %v1084, 112
        %v1217 = vpop.permute.xlu0 %1216
        %v1218 = vsel %vm722, %v1215, %v1217
        %v1219 = vsel %vm722, %v1213, %v1215
        %v1220 = vsel %vm722, %v1211, %v1213
        %v1221 = vsel %vm722, %v1217, %v1211
        %v1222 = vmul.f32 %v1220, %v371
        %v1223 = vmul.f32 %v1219, %v372
        %v1224 = vmul.f32 %v1218, %v373
        %v1225 = vmul.f32 %v1221, %v374
        %v1226 = vpack.c.bf16 %v1222, %v1222
        %v1227 = vpack.c.bf16 %v1223, %v1223
        %v1228 = vpack.c.bf16 %v1224, %v1224
        %v1229 = vpack.c.bf16 %v1225, %v1225
        %1230 = vrot.lane.b32.xlu0 %v1029, 111
        %v1231 = vpop.permute.xlu0 %1230
        %1232 = vrot.lane.b32.xlu0 %v1030, 111
        %v1233 = vpop.permute.xlu0 %1232
        %1234 = vrot.lane.b32.xlu0 %v1083, 111
        %v1235 = vpop.permute.xlu0 %1234
        %1236 = vrot.lane.b32.xlu0 %v1084, 111
        %v1237 = vpop.permute.xlu0 %1236
        %v1238 = vsel %vm743, %v1235, %v1237
        %v1239 = vsel %vm743, %v1233, %v1235
        %v1240 = vsel %vm743, %v1231, %v1233
        %v1241 = vsel %vm743, %v1237, %v1231
        %v1242 = vmul.f32 %v1240, %v411
        %v1243 = vmul.f32 %v1239, %v412
        %v1244 = vmul.f32 %v1238, %v413
        %v1245 = vmul.f32 %v1241, %v414
        %v1246 = vpack.c.bf16 %v1242, %v1242
        %v1247 = vpack.c.bf16 %v1243, %v1243
        %v1248 = vpack.c.bf16 %v1244, %v1244
        %v1249 = vpack.c.bf16 %v1245, %v1245
        %v1254 = vrot.slane %v1122, 4
        %v1255 = vrot.slane %v1123, 4
        %v1256 = vrot.slane %v1124, 4
        %v1257 = vrot.slane %v1125, 4
        %v1262 = vrot.slane %v1162, 4
        %v1263 = vrot.slane %v1163, 4
        %v1264 = vrot.slane %v1164, 4
        %v1265 = vrot.slane %v1165, 4
        %v1270 = vrot.slane %v1186, 4
        %v1271 = vrot.slane %v1187, 4
        %v1272 = vrot.slane %v1188, 4
        %v1273 = vrot.slane %v1189, 4
        %v1278 = vrot.slane %v1226, 4
        %v1279 = vrot.slane %v1227, 4
        %v1280 = vrot.slane %v1228, 4
        %v1281 = vrot.slane %v1229, 4
        %v1284 = vsel %vm423, %v1102, %v1254
        %v1288 = vsel %vm423, %v1103, %v1255
        %v1292 = vsel %vm423, %v1104, %v1256
        %v1296 = vsel %vm423, %v1105, %v1257
        %v1300 = vsel %vm423, %v1142, %v1262
        %v1304 = vsel %vm423, %v1143, %v1263
        %v1308 = vsel %vm423, %v1144, %v1264
        %v1312 = vsel %vm423, %v1145, %v1265
        %v1316 = vsel %vm423, %v1166, %v1270
        %v1320 = vsel %vm423, %v1167, %v1271
        %v1324 = vsel %vm423, %v1168, %v1272
        %v1328 = vsel %vm423, %v1169, %v1273
        %v1332 = vsel %vm423, %v1206, %v1278
        %v1336 = vsel %vm423, %v1207, %v1279
        %v1340 = vsel %vm423, %v1208, %v1280
        %v1344 = vsel %vm423, %v1209, %v1281
        %v1346 = vld [vmem:[%s8] sm:$0xff]
        %1348 = vset.pattern.permute.xlu0 0
        %1349 = vperm.xlu0 %1348, %v1346
        %v1350 = vpop.permute.xlu0 %1349
        %v1353 = vsel %vm858, %v1085, 0
        %v1356 = vsel %vm423, %v1246, 0
        %v1359 = vsel %vm423, %v1247, 0
        %v1362 = vsel %vm423, %v1248, 0
        %v1365 = vsel %vm423, %v1249, 0
        %1367 = vmatprep.subr.bf16.mxu0 0
        %1368 = vmatpush1.bf16.msra.mxu0 0
        %1369 = vmatprep.subr.bf16.mxu0 0
        %1370 = vmatpush1.bf16.msra.mxu0 0
        %1371 = vmatprep.subr.bf16.mxu0 0
        %1372 = vmatpush1.bf16.msra.mxu0 0
        %1373 = vmatprep.subr.bf16.mxu0 %v1359
        %1374 = vmatpush1.bf16.msra.mxu0 %v1356
        %1375 = vmatprep.subr.bf16.mxu0 %v1336
        %1376 = vmatpush1.bf16.msra.mxu0 %v1332
        %1377 = vmatprep.subr.bf16.mxu0 %v1320
        %1378 = vmatpush1.bf16.msra.mxu0 %v1316
        %1379 = vmatprep.subr.bf16.mxu0 %v1304
        %1380 = vmatpush1.bf16.msra.mxu0 %v1300
        %1381 = vmatprep.subr.bf16.mxu0 %v1288
        %1382 = vmatpush1.bf16.msra.mxu0 %v1284
        %1383 = vmatprep.subr.bf16.mxu0 0
        %1384 = vmatpush2.bf16.msra.mxu0 0
        %1385 = vmatprep.subr.bf16.mxu0 0
        %1386 = vmatpush2.bf16.msra.mxu0 0
        %1387 = vmatprep.subr.bf16.mxu0 0
        %1388 = vmatpush2.bf16.msra.mxu0 0
        %1389 = vmatprep.subr.bf16.mxu0 0
        %1390 = vmatpush2.bf16.msra.mxu0 0
        %1391 = vmatprep.subr.bf16.mxu0 0
        %1392 = vmatpush2.bf16.msra.mxu0 0
        %1393 = vmatprep.subr.bf16.mxu0 0
        %1394 = vmatpush2.bf16.msra.mxu0 0
        %1395 = vmatprep.subr.bf16.mxu0 0
        %1396 = vmatpush2.bf16.msra.mxu0 0
        %1397 = vmatprep.subr.bf16.mxu0 0
        %1398 = vmatpush2.bf16.msra.mxu0 0
        %1399 = vmatprep.mubr.bf16.mxu0 0
        %1400 = vmatmul.mubr.bf16.gmra.mxu0 %v1353
        %v1401 = vpop.f32.mrf.mxu0
        %v1402 = vadd.f32 %v1350, %v1401
        %v1403 = vpop.f32.mrf.mxu0
        %v1404 = vadd.f32 %v1350, %v1403
        %v1405 = vpop.f32.mrf.mxu0
        %v1406 = vpop.f32.mrf.mxu0
        %1407 = vdwg.mxu0
        %1408 = vmatprep.subr.bf16.mxu0 0
        %1409 = vmatpush1.bf16.msra.mxu0 0
        %1410 = vmatprep.subr.bf16.mxu0 0
        %1411 = vmatpush1.bf16.msra.mxu0 0
        %1412 = vmatprep.subr.bf16.mxu0 0
        %1413 = vmatpush1.bf16.msra.mxu0 0
        %1414 = vmatprep.subr.bf16.mxu0 %v1365
        %1415 = vmatpush1.bf16.msra.mxu0 %v1362
        %1416 = vmatprep.subr.bf16.mxu0 %v1344
        %1417 = vmatpush1.bf16.msra.mxu0 %v1340
        %1418 = vmatprep.subr.bf16.mxu0 %v1328
        %1419 = vmatpush1.bf16.msra.mxu0 %v1324
        %1420 = vmatprep.subr.bf16.mxu0 %v1312
        %1421 = vmatpush1.bf16.msra.mxu0 %v1308
        %1422 = vmatprep.subr.bf16.mxu0 %v1296
        %1423 = vmatpush1.bf16.msra.mxu0 %v1292
        %1424 = vmatprep.subr.bf16.mxu0 0
        %1425 = vmatpush2.bf16.msra.mxu0 0
        %1426 = vmatprep.subr.bf16.mxu0 0
        %1427 = vmatpush2.bf16.msra.mxu0 0
        %1428 = vmatprep.subr.bf16.mxu0 0
        %1429 = vmatpush2.bf16.msra.mxu0 0
        %1430 = vmatprep.subr.bf16.mxu0 0
        %1431 = vmatpush2.bf16.msra.mxu0 0
        %1432 = vmatprep.subr.bf16.mxu0 0
        %1433 = vmatpush2.bf16.msra.mxu0 0
        %1434 = vmatprep.subr.bf16.mxu0 0
        %1435 = vmatpush2.bf16.msra.mxu0 0
        %1436 = vmatprep.subr.bf16.mxu0 0
        %1437 = vmatpush2.bf16.msra.mxu0 0
        %1438 = vmatprep.subr.bf16.mxu0 0
        %1439 = vmatpush2.bf16.msra.mxu0 0
        %1440 = vmatprep.mubr.bf16.mxu0 0
        %1441 = vmatmul.mubr.bf16.gmra.mxu0 %v1353
        %v1442 = vpop.f32.mrf.mxu0
        %v1443 = vadd.f32 %v1350, %v1442
        %v1444 = vpop.f32.mrf.mxu0
        %v1445 = vadd.f32 %v1350, %v1444
        %v1446 = vpop.f32.mrf.mxu0
        %v1447 = vpop.f32.mrf.mxu0
        %1448 = vdwg.mxu0
        %v1449 = vmul.f32 %v1402, 0.5
        %v1450 = vmul.f32 %v1404, 0.5
        %v1451 = vmul.f32 %v1443, 0.5
        %v1452 = vmul.f32 %v1445, 0.5
        %v1453 = vmul.f32 %v1402, %v960
        %v1454 = vmul.f32 %v1404, %v960
        %v1455 = vmul.f32 %v1443, %v960
        %v1456 = vmul.f32 %v1445, %v960
        %v1457 = verf.f32.pop %v1453
        %v1458 = verf.f32.pop %v1454
        %v1459 = verf.f32.pop %v1455
        %v1460 = verf.f32.pop %v1456
        %v1461 = vadd.f32 %v1457, 1.0
        %v1462 = vadd.f32 %v1458, 1.0
        %v1463 = vadd.f32 %v1459, 1.0
        %v1464 = vadd.f32 %v1460, 1.0
        %v1465 = vmul.f32 %v1449, %v1461
        %v1466 = vmul.f32 %v1450, %v1462
        %v1467 = vmul.f32 %v1451, %v1463
        %v1468 = vmul.f32 %v1452, %v1464
        %1469 = vst [vmem:[%s328] sm:$0xff] %v1465
        %1470 = vst [vmem:[%s328 + $0x8] sm:$0xff] %v1466
        %s1471 = scalar_lea.vmem %s328, 16 [#allocation2]
        %1472 = vst [vmem:[%s1471] sm:$0xff] %v1467
        %1473 = vst [vmem:[%s1471 + $0x8] sm:$0xff] %v1468
        %s1474 = sand.u32 %s225, 1
        %s1475 = scalar_lea.sflag [#allocation3], %s1474
        %s1476 = sand.u32 %s225, 1
        %s1477 = smul.addr %s1476, 32
        %s1478 = scalar_lea.vmem [#allocation2], %s1477
        // Predicated region
        $region57: #{tpu_custom_call.1} parent=55 // pred_check
          %p1479 = pneg %p235
        $region58: #{tpu_custom_call.1} parent=55 // pred_check_branch
          %1481 = sbr.rel (%p1479) target = $region60
        $region59: #{tpu_custom_call.1} parent=55 // pred_region
          %s1482 = smul.u32 2, %s23
          %s1484 = ssub.s32 512, 512
          %1485 = vsyncadd %s1475, %s1484
          %s1486 = smul.addr %s1482, 2
          %s1487 = smul.addr %s1486, 128
          %s1488 = scalar_lea.hbm %s9, %s1487
          %s1489 = sshll.u32 %s1478, 4
          %s1490 = int_to_ptr.vmem [resolvable:$true] %s1489
          %1495 = dma.vmem_to_hbm [thread:$0]  %s1490, 512, %s1488, %s1475, 256, 256, 16
        $region60: #{tpu_custom_call.1} parent=55 // pred_fallthru
          _
      $region56: #{tpu_custom_call.1} parent=5 // pred_fallthru
        _
      %p1496 = scmp.le.s32.totalorder 2, %s18
      // Predicated region
      $region61: #{tpu_custom_call.1} parent=5 // pred_check
        %p1497 = pneg %p1496
      $region62: #{tpu_custom_call.1} parent=5 // pred_check_branch
        %1499 = sbr.rel (%p1497) target = $region64
      $region63: #{tpu_custom_call.1} parent=5 // pred_region
        %s1500 = ssub.s32 %s18, 2
        // Predicated region
        $region65: #{tpu_custom_call.1} parent=63 // pred_check
          %p1501 = pneg %p241
        $region66: #{tpu_custom_call.1} parent=63 // pred_check_branch
          %1503 = sbr.rel (%p1501) target = $region68
        $region67: #{tpu_custom_call.1} parent=63 // pred_region
          %s1504 = sand.u32 %s226, 1
          %s1505 = scalar_lea.sflag [#allocation3], %s1504
          %s1506 = sand.u32 %s226, 1
          %s1507 = smul.addr %s1506, 32
          %s1508 = scalar_lea.vmem [#allocation2], %s1507
          %1509 = dma.done %s1505, 512
        $region68: #{tpu_custom_call.1} parent=63 // pred_fallthru
          _
      $region64: #{tpu_custom_call.1} parent=5 // pred_fallthru
        _
    $region6: #{tpu_custom_call.1} parent=1 // loop_footer
      %s22 = sadd.s32 1, %s18
    $region7: #{tpu_custom_call.1} parent=1 // loop_footer_branch
      %17 = sbr.rel target = $region3
    $region8: #{tpu_custom_call.1} parent=1 // loop_exit
      _
    %1510 = vsyncpa [#allocation3], 1
    %s1511 = scalar_lea.sflag [#allocation3], 1
    %1512 = vsyncpa %s1511, 1

</llo_original>
